<compile_context>
chip_gen: v6e
topology: v6e:2x2x1
jax: 0.10.0
libtpu: 0.0.40
codegen_flags: <defaults>
</compile_context>

<pallas_src>
import functools
import math

import jax
import jax.numpy as jnp
from jax.experimental import pallas as pl
from jax.experimental.pallas import tpu as pltpu


# ----------------------------------------------------------------------------
# Small helpers
# ----------------------------------------------------------------------------
def _round_up(x, m):
    return ((x + m - 1) // m) * m


def _same_pad(size, k, s):
    """TF 'SAME' padding exactly as Unit3D / MaxPool3dSamePadding.compute_pad."""
    if size % s == 0:
        pad = max(k - s, 0)
    else:
        pad = max(k - (size % s), 0)
    return (pad // 2, pad - pad // 2)


# ----------------------------------------------------------------------------
# Pallas kernel 1: fused 1x1x1 conv  ==  GEMM * scale + shift (+ReLU)
# ----------------------------------------------------------------------------
def _gemm_bn_act_kernel(a_ref, b_ref, s_ref, t_ref, o_ref, *, tn, apply_relu):
    j = pl.program_id(1)
    acc = jnp.dot(a_ref[...], b_ref[...], preferred_element_type=jnp.float32)
    off = pl.multiple_of(j * tn, tn)
    s = s_ref[:, pl.ds(off, tn)]          # scale/shift live whole in VMEM (unblocked)
    t = t_ref[:, pl.ds(off, tn)]
    y = acc * s + t
    if apply_relu:
        y = jnp.maximum(y, 0.0)
    o_ref[...] = y.astype(o_ref.dtype)


def conv1x1_bn_act(x, wm, scale, shift, apply_relu=True, tn=128):
    """x: (N,T,H,W,C) bf16; wm: (C, Np) bf16; scale/shift: (1, Np) f32 -> (N,T,H,W,Np) bf16."""
    N, T, H, W, C = x.shape
    M = N * T * H * W
    a = x.reshape(M, C)                   # no im2col expansion for 1x1x1 convs
    tm = min(1024, _round_up(M, 16))
    Mp = _round_up(M, tm)
    if Mp != M:
        a = jnp.pad(a, ((0, Mp - M), (0, 0)))
    Np = wm.shape[1]
    out = pl.pallas_call(
        functools.partial(_gemm_bn_act_kernel, tn=tn, apply_relu=apply_relu),
        out_shape=jax.ShapeDtypeStruct((Mp, Np), jnp.bfloat16),
        grid=(Mp // tm, Np // tn),
        in_specs=[
            pl.BlockSpec((tm, C), lambda i, j: (i, 0)),      # K kept whole (K <= 832)
            pl.BlockSpec((C, tn), lambda i, j: (0, j)),
            pl.BlockSpec(memory_space=pltpu.MemorySpace.VMEM),
            pl.BlockSpec(memory_space=pltpu.MemorySpace.VMEM),
        ],
        out_specs=pl.BlockSpec((tm, tn), lambda i, j: (i, j)),
        compiler_params=pltpu.CompilerParams(
            dimension_semantics=("parallel", "parallel")),
    )(a, wm, scale, shift)
    return out[:M].reshape(N, T, H, W, Np)


# ----------------------------------------------------------------------------
# Pallas kernel 2: BN-shift + ReLU epilogue for the k>1 XLA convolutions
# ----------------------------------------------------------------------------
def _bias_act_kernel(x_ref, t_ref, o_ref, *, apply_relu):
    y = x_ref[...] + t_ref[...]
    if apply_relu:
        y = jnp.maximum(y, 0.0)
    o_ref[...] = y.astype(o_ref.dtype)


def bias_act(x, shift, apply_relu=True):
    """x: (..., C) f32; shift: (1, C) f32 -> bf16 activations, same shape."""
    shape = x.shape
    C = shape[-1]
    M = x.size // C
    a = x.reshape(M, C)
    tm = min(2048, _round_up(M, 16))
    Mp = _round_up(M, tm)
    if Mp != M:
        a = jnp.pad(a, ((0, Mp - M), (0, 0)))
    out = pl.pallas_call(
        functools.partial(_bias_act_kernel, apply_relu=apply_relu),
        out_shape=jax.ShapeDtypeStruct((Mp, C), jnp.bfloat16),
        grid=(Mp // tm,),
        in_specs=[
            pl.BlockSpec((tm, C), lambda i: (i, 0)),
            pl.BlockSpec(memory_space=pltpu.MemorySpace.VMEM),
        ],
        out_specs=pl.BlockSpec((tm, C), lambda i: (i, 0)),
        compiler_params=pltpu.CompilerParams(dimension_semantics=("parallel",)),
    )(a, shift)
    return out[:M].reshape(shape)


# ----------------------------------------------------------------------------
# Pallas kernel 3: 3x3x3 / stride-1 SAME max pool (running max over shifted windows)
# ----------------------------------------------------------------------------
def _maxpool_s1_kernel(*refs, kh, kw, ho, wo):
    o_ref = refs[-1]
    m = None
    for r in refs[:-1]:                   # one ref per temporal tap
        for dh in range(kh):
            for dw in range(kw):
                v = r[0, 0, dh:dh + ho, dw:dw + wo, :]
                m = v if m is None else jnp.maximum(m, v)
    o_ref[0, 0] = m


def maxpool3x3x3_s1_pallas(x):
    """MaxPool3dSamePadding(kernel=(3,3,3), stride=1): output shape == input shape."""
    N, T, H, W, C = x.shape
    kt = kh = kw = 3
    pt, ph, pw = _same_pad(T, kt, 1), _same_pad(H, kh, 1), _same_pad(W, kw, 1)
    xp = jnp.pad(x, ((0, 0), pt, ph, pw, (0, 0)))   # zero pad, matches F.pad in the reference
    Tp, Hp, Wp = xp.shape[1:4]
    in_specs = [
        pl.BlockSpec((1, 1, Hp, Wp, C), (lambda n, t, d=dt: (n, t + d, 0, 0, 0)))
        for dt in range(kt)
    ]
    out = pl.pallas_call(
        functools.partial(_maxpool_s1_kernel, kh=kh, kw=kw, ho=H, wo=W),
        out_shape=jax.ShapeDtypeStruct((N, T, H, W, C), x.dtype),
        grid=(N, T),
        in_specs=in_specs,
        out_specs=pl.BlockSpec((1, 1, H, W, C), lambda n, t: (n, t, 0, 0, 0)),
        compiler_params=pltpu.CompilerParams(
            dimension_semantics=("arbitrary", "arbitrary")),
    )(xp, xp, xp)
    return out


# ----------------------------------------------------------------------------
# XLA building blocks (per review: k>1 convs and strided/global pools stay in XLA)
# ----------------------------------------------------------------------------
def conv3d_bn_act(x, pconv, stride, apply_relu=True):
    """k>1 Unit3D: SAME conv (bf16, BN scale folded into weights) + Pallas shift/ReLU epilogue."""
    y = jax.lax.conv_general_dilated(
        x, pconv["w"], window_strides=stride, padding="SAME",
        dimension_numbers=("NDHWC", "DHWIO", "NDHWC"),
        preferred_element_type=jnp.float32)
    return bias_act(y, pconv["shift"], apply_relu)


def maxpool3d_same(x, kernel, stride):
    # TODO(synk): strided SAME max pools use XLA reduce_window rather than a Pallas kernel.
    # init value 0 == the zero padding of MaxPool3dSamePadding (inputs are post-ReLU >= 0).
    N, T, H, W, C = x.shape
    pads = ((0, 0),
            _same_pad(T, kernel[0], stride[0]),
            _same_pad(H, kernel[1], stride[1]),
            _same_pad(W, kernel[2], stride[2]),
            (0, 0))
    return jax.lax.reduce_window(
        x, jnp.asarray(0, x.dtype), jax.lax.max,
        window_dimensions=(1,) + tuple(kernel) + (1,),
        window_strides=(1,) + tuple(stride) + (1,),
        padding=pads)


def avgpool3d_valid(x, kernel):
    """nn.AvgPool3d(kernel, stride=1, padding=0)."""
    s = jax.lax.reduce_window(
        x.astype(jnp.float32), jnp.float32(0), jax.lax.add,
        window_dimensions=(1,) + tuple(kernel) + (1,),
        window_strides=(1, 1, 1, 1, 1),
        padding="VALID")
    return s / float(kernel[0] * kernel[1] * kernel[2])


# ----------------------------------------------------------------------------
# Parameters (deterministic synthetic init; BN eval-mode folded at build time)
# ----------------------------------------------------------------------------
def _unit3d_raw(key, cin, cout, kernel, use_bn=True, use_bias=False):
    kw_, kg, kb, kbias = jax.random.split(key, 4)
    fan_in = cin * kernel[0] * kernel[1] * kernel[2]
    w = jax.random.normal(kw_, (cout, cin) + tuple(kernel), jnp.float32) * math.sqrt(2.0 / fan_in)
    if use_bn:
        gamma = 1.0 + 0.05 * jax.random.normal(kg, (cout,), jnp.float32)
        beta = 0.02 * jax.random.normal(kb, (cout,), jnp.float32)
        run_mean = jnp.zeros((cout,), jnp.float32)
        run_var = jnp.ones((cout,), jnp.float32)
        scale = gamma * jax.lax.rsqrt(run_var + 1e-3)   # BatchNorm3d(eps=0.001), eval mode
        shift = beta - run_mean * scale
    else:
        scale = jnp.ones((cout,), jnp.float32)
        shift = jnp.zeros((cout,), jnp.float32)
    if use_bias:
        bias = 0.01 * jax.random.normal(kbias, (cout,), jnp.float32)
        shift = shift + bias * scale
    return w, scale, shift


def _pack_gemm_units(units):
    """Concatenate 1x1x1 units sharing an input into one GEMM weight (Cout on lanes, pad->128)."""
    wmats, scales, shifts, ns = [], [], [], []
    for w, s, t in units:
        cout, cin = w.shape[0], w.shape[1]
        wmats.append(w.reshape(cout, cin).T)
        scales.append(s)
        shifts.append(t)
        ns.append(cout)
    wm = jnp.concatenate(wmats, axis=1)
    sc = jnp.concatenate(scales)
    sh = jnp.concatenate(shifts)
    n = wm.shape[1]
    npad = _round_up(n, 128)
    wm = jnp.pad(wm, ((0, 0), (0, npad - n))).astype(jnp.bfloat16)
    sc = jnp.pad(sc, (0, npad - n), constant_values=1.0).reshape(1, npad)
    sh = jnp.pad(sh, (0, npad - n)).reshape(1, npad)
    return {"wm": wm, "scale": sc, "shift": sh, "splits": tuple(ns)}


def _pack_conv_unit(w, scale, shift):
    """k>1 conv: DHWIO layout, BN scale folded into the bf16 weights, shift kept f32."""
    wf = jnp.transpose(w, (2, 3, 4, 1, 0)) * scale.reshape(1, 1, 1, 1, -1)
    return {"w": wf.astype(jnp.bfloat16), "shift": shift.reshape(1, -1).astype(jnp.float32)}


INCEPTION_CFG = [
    ("Mixed_3b", 192, [64, 96, 128, 16, 32, 32]),
    ("Mixed_3c", 256, [128, 128, 192, 32, 96, 64]),
    ("Mixed_4b", 480, [192, 96, 208, 16, 48, 64]),
    ("Mixed_4c", 512, [160, 112, 224, 24, 64, 64]),
    ("Mixed_4d", 512, [128, 128, 256, 24, 64, 64]),
    ("Mixed_4e", 512, [112, 144, 288, 32, 64, 64]),
    ("Mixed_4f", 528, [256, 160, 320, 32, 128, 128]),
    ("Mixed_5b", 832, [256, 160, 320, 32, 128, 128]),
    ("Mixed_5c", 832, [384, 192, 384, 48, 128, 128]),
]


def build_params(key):
    counter = [0]

    def nk():
        counter[0] += 1
        return jax.random.fold_in(key, counter[0])

    P = {
        "Conv3d_1a_7x7": _pack_conv_unit(*_unit3d_raw(nk(), 1, 64, (7, 7, 7))),
        "Conv3d_2b_1x1": _pack_gemm_units([_unit3d_raw(nk(), 64, 64, (1, 1, 1))]),
        "Conv3d_2c_3x3": _pack_conv_unit(*_unit3d_raw(nk(), 64, 192, (3, 3, 3))),
    }
    for name, cin, outs in INCEPTION_CFG:
        b0 = _unit3d_raw(nk(), cin, outs[0], (1, 1, 1))
        b1a = _unit3d_raw(nk(), cin, outs[1], (1, 1, 1))
        b1b = _unit3d_raw(nk(), outs[1], outs[2], (3, 3, 3))
        b2a = _unit3d_raw(nk(), cin, outs[3], (1, 1, 1))
        b2b = _unit3d_raw(nk(), outs[3], outs[4], (3, 3, 3))
        b3b = _unit3d_raw(nk(), cin, outs[5], (1, 1, 1))
        P[name] = {
            "fused": _pack_gemm_units([b0, b1a, b2a]),   # b0/b1a/b2a share x -> one wide GEMM
            "b1b": _pack_conv_unit(*b1b),
            "b2b": _pack_conv_unit(*b2b),
            "b3b": _pack_gemm_units([b3b]),
        }
    w, _, t = _unit3d_raw(nk(), 1024, 400, (1, 1, 1), use_bn=False, use_bias=True)
    P["Logits"] = {"wm": w.reshape(400, 1024).T.astype(jnp.float32), "bias": t}
    return P


# ----------------------------------------------------------------------------
# Forward pass
# ----------------------------------------------------------------------------
def inception_module(x, p):
    f = p["fused"]
    y = conv1x1_bn_act(x, f["wm"], f["scale"], f["shift"])
    n0, n1a, n2a = f["splits"]
    b0 = y[..., :n0]
    b1 = conv3d_bn_act(y[..., n0:n0 + n1a], p["b1b"], (1, 1, 1))
    b2 = conv3d_bn_act(y[..., n0 + n1a:n0 + n1a + n2a], p["b2b"], (1, 1, 1))
    pooled = maxpool3x3x3_s1_pallas(x)
    g = p["b3b"]
    b3 = conv1x1_bn_act(pooled, g["wm"], g["scale"], g["shift"])[..., :g["splits"][0]]
    return jnp.concatenate([b0, b1, b2, b3], axis=-1)


def depth_encoder_forward(x, params):
    # x: NCDHW f32 (PyTorch layout) -> channels-last bf16 internally.
    x = jnp.transpose(x, (0, 2, 3, 4, 1)).astype(jnp.bfloat16)
    x = conv3d_bn_act(x, params["Conv3d_1a_7x7"], (2, 2, 2))            # Conv3d_1a_7x7
    x = maxpool3d_same(x, (1, 3, 3), (1, 2, 2))                         # MaxPool3d_2a_3x3
    g = params["Conv3d_2b_1x1"]
    x = conv1x1_bn_act(x, g["wm"], g["scale"], g["shift"])[..., :g["splits"][0]]
    x = conv3d_bn_act(x, params["Conv3d_2c_3x3"], (1, 1, 1))            # Conv3d_2c_3x3
    x = maxpool3d_same(x, (1, 3, 3), (1, 2, 2))                         # MaxPool3d_3a_3x3
    x = inception_module(x, params["Mixed_3b"])
    x = inception_module(x, params["Mixed_3c"])
    x = maxpool3d_same(x, (3, 3, 3), (2, 2, 2))                         # MaxPool3d_4a_3x3
    for name in ("Mixed_4b", "Mixed_4c", "Mixed_4d", "Mixed_4e", "Mixed_4f"):
        x = inception_module(x, params[name])
    x = maxpool3d_same(x, (2, 2, 2), (2, 2, 2))                         # MaxPool3d_5a_2x2
    x = inception_module(x, params["Mixed_5b"])
    x = inception_module(x, params["Mixed_5c"])
    x = avgpool3d_valid(x, (2, 7, 7))                                   # AvgPool3d([2,7,7])
    # TODO(synk): Dropout(0.5) in train mode skipped (eval-mode identity).
    N, T2, H2, W2, C2 = x.shape
    feats = x.reshape(N * T2 * H2 * W2, C2)
    # Logits 1x1x1 conv (bias, no BN, no act): M is 1-2 rows -> plain dot, not a Pallas GEMM.
    logits = feats @ params["Logits"]["wm"] + params["Logits"]["bias"]
    logits = logits.reshape(N, T2 * H2 * W2, 400)
    return jnp.transpose(logits, (0, 2, 1))                             # (N, 400, T')


# ----------------------------------------------------------------------------
if __name__ == "__main__":
    key = jax.random.PRNGKey(0)
    params = build_params(jax.random.fold_in(key, 123))
    # Smallest-ish input the I3D graph admits: spatial must reduce to >=7 after /32 (>=193) for
    # AvgPool3d([2,7,7]); temporal must reduce to >=2 before that pool (>=10 here).
    x = jax.random.normal(jax.random.fold_in(key, 7), (1, 1, 10, 200, 200), jnp.float32)

    out = depth_encoder_forward(x, params)
    out = jax.block_until_ready(out)

    assert out.shape == (1, 400, 1), out.shape
    assert bool(jnp.all(jnp.isfinite(out)))
    print("KERNEL_OK")
</pallas_src>

<mosaic_0001>
module attributes {stable_mosaic.version = 11 : i64} {
  func.func @_bias_act_kernel(%arg0: i32, %arg1: memref<2048x64xf32, #tpu.memory_space<vmem>>, %arg2: memref<1x64xf32, #tpu.memory_space<vmem>>, %arg3: memref<2048x64xbf16, #tpu.memory_space<vmem>>) attributes {dimension_semantics = [#tpu.dimension_semantics<parallel>], iteration_bounds = array<i64: 25>, scalar_prefetch = 0 : i64, scratch_operands = 0 : i64, tpu.core_type = #tpu.core_type<tc>, window_params = [{transform_indices = @transform_0, window_bounds = array<i64: 2048, 64>}, {pipeline_mode = #tpu.pipeline_mode<synchronous>, transform_indices = @transform_1, window_bounds = array<i64: 1, 64>}, {transform_indices = @transform_2, window_bounds = array<i64: 2048, 64>}]} {
    %c0 = arith.constant 0 : index
    %c0_0 = arith.constant 0 : index
    %0 = vector.load %arg1[%c0, %c0_0] : memref<2048x64xf32, #tpu.memory_space<vmem>>, vector<2048x64xf32>
    %c0_1 = arith.constant 0 : index
    %c0_2 = arith.constant 0 : index
    %1 = vector.load %arg2[%c0_1, %c0_2] : memref<1x64xf32, #tpu.memory_space<vmem>>, vector<1x64xf32>
    %2 = vector.broadcast %1 : vector<1x64xf32> to vector<2048x64xf32>
    %3 = arith.addf %0, %2 : vector<2048x64xf32>
    %cst = arith.constant 0.000000e+00 : f32
    %4 = vector.broadcast %cst : f32 to vector<2048x64xf32>
    %5 = arith.maximumf %3, %4 : vector<2048x64xf32>
    %6 = arith.truncf %5 : vector<2048x64xf32> to vector<2048x64xbf16>
    %c0_3 = arith.constant 0 : index
    %c0_4 = arith.constant 0 : index
    %7 = vector.load %arg3[%c0_3, %c0_4] : memref<2048x64xbf16, #tpu.memory_space<vmem>>, vector<2048x64xbf16>
    tpu.vector_store %arg3[%c0_3, %c0_4], %6 {strides = array<i32>} : memref<2048x64xbf16, #tpu.memory_space<vmem>>, vector<2048x64xbf16>,
    return
  }
  func.func @transform_0(%arg0: i32) -> (i32, i32) {
    %c0_i32 = arith.constant 0 : i32
    %c0_i32_0 = arith.constant 0 : i32
    return %arg0, %c0_i32 : i32, i32
  }
  func.func @transform_1(%arg0: i32) -> (i32, i32) {
    %c0_i32 = arith.constant 0 : i32
    %c0_i32_0 = arith.constant 0 : i32
    %c0_i32_1 = arith.constant 0 : i32
    return %c0_i32, %c0_i32_0 : i32, i32
  }
  func.func @transform_2(%arg0: i32) -> (i32, i32) {
    %c0_i32 = arith.constant 0 : i32
    %c0_i32_0 = arith.constant 0 : i32
    return %arg0, %c0_i32 : i32, i32
  }
}

</mosaic_0001>

<llo_original>
// kernel: tpu_custom_call.1
$region0: #{tpu_custom_call.1}
  #allocation0 [shape = 'u32[]', space=smem, size = 0x4, offset = 0x4, fixed_abs, tag = 'smem constant byte address 0x4 - core index']
  #allocation1 [shape = 'u32[144,128]{1,0:T(1,128)}', space=vmem, size = 0x12000, scoped, tag = 'internal scratch']
  %s0 = inlined_call_operand.vmem [shape: f32[51200,64], index: 0, kind: input, shape index: {}]
  %s1 = inlined_call_operand.vmem [shape: f32[1,64], index: 1, kind: input, shape index: {}]
  %s2 = inlined_call_operand.vmem [shape: bf16[51200,64], index: 2, kind: output, shape index: {}]
  %s3 = sld [smem:[#allocation0]]
  $region41: #{tpu_custom_call.1} parent=0
    _
  %s5 = ssub.s32 1, %s3
  %s6 = scalar_select 0, %s5, %s3
  loop: start=0, step=1, limit=27
  $region2: #{tpu_custom_call.1} parent=0 // loop_pre_header
    _
  $region3: #{tpu_custom_call.1} parent=0 // loop_header
    %s8 = sphi 0, %s12
    %p9 = scmp.ge.s32.totalorder %s8, 27
    %s18 = sphi 0, %s20
    %s21 = sphi 0, %s18
    %s22 = sphi 0, %s21
    %s38 = sphi 0, %s22
    %s42 = sphi 0, %s42
    %s44 = sphi 0, %s42
    %s45 = sphi 0, %s44
    %s59 = sphi 0, %s45
    %s65 = sphi 0, %s67
    %s68 = sphi 0, %s65
    %s69 = sphi 0, %s68
    %s85 = sphi 0, %s69
  $region4: #{tpu_custom_call.1} parent=0 // loop_header_branch
    %11 = sbr.rel (%p9) target = $region8
  $region5: #{tpu_custom_call.1} parent=0 // loop_body
    %s13 = ssub.s32 %s8, 1
    %s14 = ssub.s32 %s8, 2
    %s15 = sadd.s32 %s8, 1
    %s16 = ssub.s32 %s8, %s15
    %p17 = scmp.eq.s32.totalorder %s16, 0
    %s19 = sadd.s32 %s18, 1
    %s20 = scalar_select %p17, %s18, %s19
    %p23 = pneg %p17
    %p24 = scmp.eq.s32.totalorder %s8, 24
    %p25 = por %p23, %p24
    %p26 = scmp.ne.s32.totalorder %s18, %s21
    %p27 = scmp.eq.s32.totalorder %s8, 0
    %p28 = por %p26, %p27
    %p29 = scmp.ne.s32.totalorder %s18, %s21
    %p30 = scmp.eq.s32.totalorder %s13, 24
    %p31 = por %p29, %p30
    %p32 = scmp.ne.s32.totalorder %s21, %s22
    %p33 = scmp.eq.s32.totalorder %s13, 0
    %p34 = por %p32, %p33
    %p35 = scmp.ne.s32.totalorder %s21, %s22
    %p36 = scmp.eq.s32.totalorder %s14, 24
    %p37 = por %p35, %p36
    %p39 = scmp.ne.s32.totalorder %s22, %s38
    %p40 = scmp.eq.s32.totalorder %s14, 0
    %p41 = por %p39, %p40
    %s43 = sadd.s32 %s42, 1
    %p46 = scmp.eq.s32.totalorder %s8, 24
    %p47 = scmp.ne.s32.totalorder %s42, %s44
    %p48 = scmp.eq.s32.totalorder %s8, 0
    %p49 = por %p47, %p48
    %p50 = scmp.ne.s32.totalorder %s42, %s44
    %p51 = scmp.eq.s32.totalorder %s13, 24
    %p52 = por %p50, %p51
    %p53 = scmp.ne.s32.totalorder %s44, %s45
    %p54 = scmp.eq.s32.totalorder %s13, 0
    %p55 = por %p53, %p54
    %p56 = scmp.ne.s32.totalorder %s44, %s45
    %p57 = scmp.eq.s32.totalorder %s14, 24
    %p58 = por %p56, %p57
    %p60 = scmp.ne.s32.totalorder %s45, %s59
    %p61 = scmp.eq.s32.totalorder %s14, 0
    %p62 = por %p60, %p61
    %s63 = ssub.s32 %s8, %s15
    %p64 = scmp.eq.s32.totalorder %s63, 0
    %s66 = sadd.s32 %s65, 1
    %s67 = scalar_select %p64, %s65, %s66
    %p70 = pneg %p64
    %p71 = scmp.eq.s32.totalorder %s8, 24
    %p72 = por %p70, %p71
    %p73 = scmp.ne.s32.totalorder %s65, %s68
    %p74 = scmp.eq.s32.totalorder %s8, 0
    %p75 = por %p73, %p74
    %p76 = scmp.ne.s32.totalorder %s65, %s68
    %p77 = scmp.eq.s32.totalorder %s13, 24
    %p78 = por %p76, %p77
    %p79 = scmp.ne.s32.totalorder %s68, %s69
    %p80 = scmp.eq.s32.totalorder %s13, 0
    %p81 = por %p79, %p80
    %p82 = scmp.ne.s32.totalorder %s68, %s69
    %p83 = scmp.eq.s32.totalorder %s14, 24
    %p84 = por %p82, %p83
    %p86 = scmp.ne.s32.totalorder %s69, %s85
    %p87 = scmp.eq.s32.totalorder %s14, 0
    %p88 = por %p86, %p87
    %p89 = scmp.le.s32.totalorder 1, %s8
    %p90 = scmp.lt.s32.totalorder %s8, 26
    %p91 = pnand %p89, %p90
    %p92 = pneg %p91
    // Predicated region
    $region9: #{tpu_custom_call.1} parent=5 // pred_check
      _
    $region10: #{tpu_custom_call.1} parent=5 // pred_check_branch
      %94 = sbr.rel (%p91) target = $region12
    $region11: #{tpu_custom_call.1} parent=5 // pred_region
      %s95 = ssub.s32 %s8, 1
      // Predicated region
      $region13: #{tpu_custom_call.1} parent=11 // pred_check
        %p96 = pneg %p55
      $region14: #{tpu_custom_call.1} parent=11 // pred_check_branch
        %98 = sbr.rel (%p96) target = $region16
      $region15: #{tpu_custom_call.1} parent=11 // pred_region
        _
      $region16: #{tpu_custom_call.1} parent=11 // pred_fallthru
        _
    $region12: #{tpu_custom_call.1} parent=5 // pred_fallthru
      _
    %p99 = scmp.lt.s32.totalorder %s8, 25
    // Predicated region
    $region17: #{tpu_custom_call.1} parent=5 // pred_check
      %p100 = pneg %p99
    $region18: #{tpu_custom_call.1} parent=5 // pred_check_branch
      %102 = sbr.rel (%p100) target = $region20
    $region19: #{tpu_custom_call.1} parent=5 // pred_region
      // Predicated region
      $region21: #{tpu_custom_call.1} parent=19 // pred_check
        %p103 = pneg %p28
      $region22: #{tpu_custom_call.1} parent=19 // pred_check_branch
        %105 = sbr.rel (%p103) target = $region24
      $region23: #{tpu_custom_call.1} parent=19 // pred_region
        %s106 = smul.u32 256, %s8
        %p107 = scmp.lt.s32.totalorder %s106, 6399
        %s108 = scalar_select %p107, %s106, 6399
        %s109 = smul.addr %s108, 8
        %s110 = scalar_lea.vmem %s0, %s109
        %s111 = smul.u32 256, %s8
      $region24: #{tpu_custom_call.1} parent=19 // pred_fallthru
        _
    $region20: #{tpu_custom_call.1} parent=5 // pred_fallthru
      _
    %p112 = scmp.le.s32.totalorder 1, %s8
    %p113 = scmp.lt.s32.totalorder %s8, 26
    %p114 = pnand %p112, %p113
    %p115 = pneg %p114
    // Predicated region
    $region25: #{tpu_custom_call.1} parent=5 // pred_check
      _
    $region26: #{tpu_custom_call.1} parent=5 // pred_check_branch
      %117 = sbr.rel (%p114) target = $region28
    $region27: #{tpu_custom_call.1} parent=5 // pred_region
      %s118 = ssub.s32 %s8, 1
      %s119 = smul.u32 256, %s13
      %p120 = scmp.lt.s32.totalorder %s119, 6399
      %s121 = scalar_select %p120, %s119, 6399
      %s122 = smul.addr %s121, 8
      %s123 = scalar_lea.vmem %s0, %s122
      %p124 = pneg %p34
      %p125 = pneg %p31
      %p126 = pneg %p55
      %p127 = pneg %p52
      %p128 = pneg %p81
      %p129 = pneg %p78
      %s130 = smul.u32 256, %s13
      %p131 = scmp.lt.s32.totalorder %s130, 6399
      %s132 = scalar_select %p131, %s130, 6399
      %s133 = smul.addr %s132, 4
      %s134 = scalar_lea.vmem %s2, %s133
      %s135 = smul.u32 256, %s13
      %p136 = scmp.lt.s32.totalorder %s135, 6399
      %s137 = scalar_select %p136, %s135, 6399
      %s138 = smul.addr %s137, 8
      %s139 = scalar_lea.vmem %s0, %s138
      %s140 = smul.u32 256, %s13
      %s141 = smul.u32 256, %s13
      %p142 = scmp.lt.s32.totalorder %s141, 6399
      %s143 = scalar_select %p142, %s141, 6399
      %s144 = smul.addr %s143, 4
      %s145 = scalar_lea.vmem %s2, %s144
      %s146 = smul.u32 256, %s13
      %v147 = vld [vmem:[%s139] sm:$0xff]
      %v148 = vld [vmem:[%s139 + $0x8] sm:$0xff]
      %v149 = vld [vmem:[%s139 + $0x10] sm:$0xff]
      %v150 = vld [vmem:[%s139 + $0x18] sm:$0xff]
      %v151 = vld [vmem:[%s139 + $0x20] sm:$0xff]
      %v152 = vld [vmem:[%s139 + $0x28] sm:$0xff]
      %v153 = vld [vmem:[%s139 + $0x30] sm:$0xff]
      %v154 = vld [vmem:[%s139 + $0x38] sm:$0xff]
      %v155 = vld [vmem:[%s139 + $0x40] sm:$0xff]
      %v156 = vld [vmem:[%s139 + $0x48] sm:$0xff]
      %v157 = vld [vmem:[%s139 + $0x50] sm:$0xff]
      %v158 = vld [vmem:[%s139 + $0x58] sm:$0xff]
      %v159 = vld [vmem:[%s139 + $0x60] sm:$0xff]
      %v160 = vld [vmem:[%s139 + $0x68] sm:$0xff]
      %v161 = vld [vmem:[%s139 + $0x70] sm:$0xff]
      %v162 = vld [vmem:[%s139 + $0x78] sm:$0xff]
      %v163 = vld [vmem:[%s139 + $0x80] sm:$0xff]
      %v164 = vld [vmem:[%s139 + $0x88] sm:$0xff]
      %v165 = vld [vmem:[%s139 + $0x90] sm:$0xff]
      %v166 = vld [vmem:[%s139 + $0x98] sm:$0xff]
      %v167 = vld [vmem:[%s139 + $0xa0] sm:$0xff]
      %v168 = vld [vmem:[%s139 + $0xa8] sm:$0xff]
      %v169 = vld [vmem:[%s139 + $0xb0] sm:$0xff]
      %v170 = vld [vmem:[%s139 + $0xb8] sm:$0xff]
      %v171 = vld [vmem:[%s139 + $0xc0] sm:$0xff]
      %v172 = vld [vmem:[%s139 + $0xc8] sm:$0xff]
      %v173 = vld [vmem:[%s139 + $0xd0] sm:$0xff]
      %v174 = vld [vmem:[%s139 + $0xd8] sm:$0xff]
      %v175 = vld [vmem:[%s139 + $0xe0] sm:$0xff]
      %v176 = vld [vmem:[%s139 + $0xe8] sm:$0xff]
      %v177 = vld [vmem:[%s139 + $0xf0] sm:$0xff]
      %v178 = vld [vmem:[%s139 + $0xf8] sm:$0xff]
      %v179 = vld [vmem:[%s139 + $0x100] sm:$0xff]
      %v180 = vld [vmem:[%s139 + $0x108] sm:$0xff]
      %v181 = vld [vmem:[%s139 + $0x110] sm:$0xff]
      %v182 = vld [vmem:[%s139 + $0x118] sm:$0xff]
      %v183 = vld [vmem:[%s139 + $0x120] sm:$0xff]
      %v184 = vld [vmem:[%s139 + $0x128] sm:$0xff]
      %v185 = vld [vmem:[%s139 + $0x130] sm:$0xff]
      %v186 = vld [vmem:[%s139 + $0x138] sm:$0xff]
      %v187 = vld [vmem:[%s139 + $0x140] sm:$0xff]
      %v188 = vld [vmem:[%s139 + $0x148] sm:$0xff]
      %v189 = vld [vmem:[%s139 + $0x150] sm:$0xff]
      %v190 = vld [vmem:[%s139 + $0x158] sm:$0xff]
      %v191 = vld [vmem:[%s139 + $0x160] sm:$0xff]
      %v192 = vld [vmem:[%s139 + $0x168] sm:$0xff]
      %v193 = vld [vmem:[%s139 + $0x170] sm:$0xff]
      %v194 = vld [vmem:[%s139 + $0x178] sm:$0xff]
      %v195 = vld [vmem:[%s139 + $0x180] sm:$0xff]
      %v196 = vld [vmem:[%s139 + $0x188] sm:$0xff]
      %v197 = vld [vmem:[%s139 + $0x190] sm:$0xff]
      %v198 = vld [vmem:[%s139 + $0x198] sm:$0xff]
      %v199 = vld [vmem:[%s139 + $0x1a0] sm:$0xff]
      %v200 = vld [vmem:[%s139 + $0x1a8] sm:$0xff]
      %v201 = vld [vmem:[%s139 + $0x1b0] sm:$0xff]
      %v202 = vld [vmem:[%s139 + $0x1b8] sm:$0xff]
      %v203 = vld [vmem:[%s139 + $0x1c0] sm:$0xff]
      %v204 = vld [vmem:[%s139 + $0x1c8] sm:$0xff]
      %v205 = vld [vmem:[%s139 + $0x1d0] sm:$0xff]
      %v206 = vld [vmem:[%s139 + $0x1d8] sm:$0xff]
      %v207 = vld [vmem:[%s139 + $0x1e0] sm:$0xff]
      %v208 = vld [vmem:[%s139 + $0x1e8] sm:$0xff]
      %v209 = vld [vmem:[%s139 + $0x1f0] sm:$0xff]
      %v210 = vld [vmem:[%s139 + $0x1f8] sm:$0xff]
      %v211 = vld [vmem:[%s139 + $0x200] sm:$0xff]
      %v212 = vld [vmem:[%s139 + $0x208] sm:$0xff]
      %v213 = vld [vmem:[%s139 + $0x210] sm:$0xff]
      %v214 = vld [vmem:[%s139 + $0x218] sm:$0xff]
      %v215 = vld [vmem:[%s139 + $0x220] sm:$0xff]
      %v216 = vld [vmem:[%s139 + $0x228] sm:$0xff]
      %v217 = vld [vmem:[%s139 + $0x230] sm:$0xff]
      %v218 = vld [vmem:[%s139 + $0x238] sm:$0xff]
      %v219 = vld [vmem:[%s139 + $0x240] sm:$0xff]
      %v220 = vld [vmem:[%s139 + $0x248] sm:$0xff]
      %v221 = vld [vmem:[%s139 + $0x250] sm:$0xff]
      %v222 = vld [vmem:[%s139 + $0x258] sm:$0xff]
      %v223 = vld [vmem:[%s139 + $0x260] sm:$0xff]
      %v224 = vld [vmem:[%s139 + $0x268] sm:$0xff]
      %v225 = vld [vmem:[%s139 + $0x270] sm:$0xff]
      %v226 = vld [vmem:[%s139 + $0x278] sm:$0xff]
      %v227 = vld [vmem:[%s139 + $0x280] sm:$0xff]
      %v228 = vld [vmem:[%s139 + $0x288] sm:$0xff]
      %v229 = vld [vmem:[%s139 + $0x290] sm:$0xff]
      %v230 = vld [vmem:[%s139 + $0x298] sm:$0xff]
      %v231 = vld [vmem:[%s139 + $0x2a0] sm:$0xff]
      %v232 = vld [vmem:[%s139 + $0x2a8] sm:$0xff]
      %v233 = vld [vmem:[%s139 + $0x2b0] sm:$0xff]
      %v234 = vld [vmem:[%s139 + $0x2b8] sm:$0xff]
      %v235 = vld [vmem:[%s139 + $0x2c0] sm:$0xff]
      %v236 = vld [vmem:[%s139 + $0x2c8] sm:$0xff]
      %v237 = vld [vmem:[%s139 + $0x2d0] sm:$0xff]
      %v238 = vld [vmem:[%s139 + $0x2d8] sm:$0xff]
      %v239 = vld [vmem:[%s139 + $0x2e0] sm:$0xff]
      %v240 = vld [vmem:[%s139 + $0x2e8] sm:$0xff]
      %v241 = vld [vmem:[%s139 + $0x2f0] sm:$0xff]
      %v242 = vld [vmem:[%s139 + $0x2f8] sm:$0xff]
      %v243 = vld [vmem:[%s139 + $0x300] sm:$0xff]
      %v244 = vld [vmem:[%s139 + $0x308] sm:$0xff]
      %v245 = vld [vmem:[%s139 + $0x310] sm:$0xff]
      %v246 = vld [vmem:[%s139 + $0x318] sm:$0xff]
      %v247 = vld [vmem:[%s139 + $0x320] sm:$0xff]
      %v248 = vld [vmem:[%s139 + $0x328] sm:$0xff]
      %v249 = vld [vmem:[%s139 + $0x330] sm:$0xff]
      %v250 = vld [vmem:[%s139 + $0x338] sm:$0xff]
      %v251 = vld [vmem:[%s139 + $0x340] sm:$0xff]
      %v252 = vld [vmem:[%s139 + $0x348] sm:$0xff]
      %v253 = vld [vmem:[%s139 + $0x350] sm:$0xff]
      %v254 = vld [vmem:[%s139 + $0x358] sm:$0xff]
      %v255 = vld [vmem:[%s139 + $0x360] sm:$0xff]
      %v256 = vld [vmem:[%s139 + $0x368] sm:$0xff]
      %v257 = vld [vmem:[%s139 + $0x370] sm:$0xff]
      %v258 = vld [vmem:[%s139 + $0x378] sm:$0xff]
      %v259 = vld [vmem:[%s139 + $0x380] sm:$0xff]
      %v260 = vld [vmem:[%s139 + $0x388] sm:$0xff]
      %v261 = vld [vmem:[%s139 + $0x390] sm:$0xff]
      %v262 = vld [vmem:[%s139 + $0x398] sm:$0xff]
      %v263 = vld [vmem:[%s139 + $0x3a0] sm:$0xff]
      %v264 = vld [vmem:[%s139 + $0x3a8] sm:$0xff]
      %v265 = vld [vmem:[%s139 + $0x3b0] sm:$0xff]
      %v266 = vld [vmem:[%s139 + $0x3b8] sm:$0xff]
      %v267 = vld [vmem:[%s139 + $0x3c0] sm:$0xff]
      %v268 = vld [vmem:[%s139 + $0x3c8] sm:$0xff]
      %v269 = vld [vmem:[%s139 + $0x3d0] sm:$0xff]
      %v270 = vld [vmem:[%s139 + $0x3d8] sm:$0xff]
      %v271 = vld [vmem:[%s139 + $0x3e0] sm:$0xff]
      %v272 = vld [vmem:[%s139 + $0x3e8] sm:$0xff]
      %v273 = vld [vmem:[%s139 + $0x3f0] sm:$0xff]
      %v274 = vld [vmem:[%s139 + $0x3f8] sm:$0xff]
      %v275 = vld [vmem:[%s139 + $0x400] sm:$0xff]
      %v276 = vld [vmem:[%s139 + $0x408] sm:$0xff]
      %v277 = vld [vmem:[%s139 + $0x410] sm:$0xff]
      %v278 = vld [vmem:[%s139 + $0x418] sm:$0xff]
      %v279 = vld [vmem:[%s139 + $0x420] sm:$0xff]
      %v280 = vld [vmem:[%s139 + $0x428] sm:$0xff]
      %v281 = vld [vmem:[%s139 + $0x430] sm:$0xff]
      %v282 = vld [vmem:[%s139 + $0x438] sm:$0xff]
      %v283 = vld [vmem:[%s139 + $0x440] sm:$0xff]
      %v284 = vld [vmem:[%s139 + $0x448] sm:$0xff]
      %v285 = vld [vmem:[%s139 + $0x450] sm:$0xff]
      %v286 = vld [vmem:[%s139 + $0x458] sm:$0xff]
      %v287 = vld [vmem:[%s139 + $0x460] sm:$0xff]
      %v288 = vld [vmem:[%s139 + $0x468] sm:$0xff]
      %v289 = vld [vmem:[%s139 + $0x470] sm:$0xff]
      %v290 = vld [vmem:[%s139 + $0x478] sm:$0xff]
      %v291 = vld [vmem:[%s139 + $0x480] sm:$0xff]
      %v292 = vld [vmem:[%s139 + $0x488] sm:$0xff]
      %v293 = vld [vmem:[%s139 + $0x490] sm:$0xff]
      %v294 = vld [vmem:[%s139 + $0x498] sm:$0xff]
      %v295 = vld [vmem:[%s139 + $0x4a0] sm:$0xff]
      %v296 = vld [vmem:[%s139 + $0x4a8] sm:$0xff]
      %v297 = vld [vmem:[%s139 + $0x4b0] sm:$0xff]
      %v298 = vld [vmem:[%s139 + $0x4b8] sm:$0xff]
      %v299 = vld [vmem:[%s139 + $0x4c0] sm:$0xff]
      %v300 = vld [vmem:[%s139 + $0x4c8] sm:$0xff]
      %v301 = vld [vmem:[%s139 + $0x4d0] sm:$0xff]
      %v302 = vld [vmem:[%s139 + $0x4d8] sm:$0xff]
      %v303 = vld [vmem:[%s139 + $0x4e0] sm:$0xff]
      %v304 = vld [vmem:[%s139 + $0x4e8] sm:$0xff]
      %v305 = vld [vmem:[%s139 + $0x4f0] sm:$0xff]
      %v306 = vld [vmem:[%s139 + $0x4f8] sm:$0xff]
      %v307 = vld [vmem:[%s139 + $0x500] sm:$0xff]
      %v308 = vld [vmem:[%s139 + $0x508] sm:$0xff]
      %v309 = vld [vmem:[%s139 + $0x510] sm:$0xff]
      %v310 = vld [vmem:[%s139 + $0x518] sm:$0xff]
      %v311 = vld [vmem:[%s139 + $0x520] sm:$0xff]
      %v312 = vld [vmem:[%s139 + $0x528] sm:$0xff]
      %v313 = vld [vmem:[%s139 + $0x530] sm:$0xff]
      %v314 = vld [vmem:[%s139 + $0x538] sm:$0xff]
      %v315 = vld [vmem:[%s139 + $0x540] sm:$0xff]
      %v316 = vld [vmem:[%s139 + $0x548] sm:$0xff]
      %v317 = vld [vmem:[%s139 + $0x550] sm:$0xff]
      %v318 = vld [vmem:[%s139 + $0x558] sm:$0xff]
      %v319 = vld [vmem:[%s139 + $0x560] sm:$0xff]
      %v320 = vld [vmem:[%s139 + $0x568] sm:$0xff]
      %v321 = vld [vmem:[%s139 + $0x570] sm:$0xff]
      %v322 = vld [vmem:[%s139 + $0x578] sm:$0xff]
      %v323 = vld [vmem:[%s139 + $0x580] sm:$0xff]
      %v324 = vld [vmem:[%s139 + $0x588] sm:$0xff]
      %v325 = vld [vmem:[%s139 + $0x590] sm:$0xff]
      %v326 = vld [vmem:[%s139 + $0x598] sm:$0xff]
      %v327 = vld [vmem:[%s139 + $0x5a0] sm:$0xff]
      %v328 = vld [vmem:[%s139 + $0x5a8] sm:$0xff]
      %v329 = vld [vmem:[%s139 + $0x5b0] sm:$0xff]
      %v330 = vld [vmem:[%s139 + $0x5b8] sm:$0xff]
      %v331 = vld [vmem:[%s139 + $0x5c0] sm:$0xff]
      %v332 = vld [vmem:[%s139 + $0x5c8] sm:$0xff]
      %v333 = vld [vmem:[%s139 + $0x5d0] sm:$0xff]
      %v334 = vld [vmem:[%s139 + $0x5d8] sm:$0xff]
      %v335 = vld [vmem:[%s139 + $0x5e0] sm:$0xff]
      %v336 = vld [vmem:[%s139 + $0x5e8] sm:$0xff]
      %v337 = vld [vmem:[%s139 + $0x5f0] sm:$0xff]
      %v338 = vld [vmem:[%s139 + $0x5f8] sm:$0xff]
      %v339 = vld [vmem:[%s139 + $0x600] sm:$0xff]
      %v340 = vld [vmem:[%s139 + $0x608] sm:$0xff]
      %v341 = vld [vmem:[%s139 + $0x610] sm:$0xff]
      %v342 = vld [vmem:[%s139 + $0x618] sm:$0xff]
      %v343 = vld [vmem:[%s139 + $0x620] sm:$0xff]
      %v344 = vld [vmem:[%s139 + $0x628] sm:$0xff]
      %v345 = vld [vmem:[%s139 + $0x630] sm:$0xff]
      %v346 = vld [vmem:[%s139 + $0x638] sm:$0xff]
      %v347 = vld [vmem:[%s139 + $0x640] sm:$0xff]
      %v348 = vld [vmem:[%s139 + $0x648] sm:$0xff]
      %v349 = vld [vmem:[%s139 + $0x650] sm:$0xff]
      %v350 = vld [vmem:[%s139 + $0x658] sm:$0xff]
      %v351 = vld [vmem:[%s139 + $0x660] sm:$0xff]
      %v352 = vld [vmem:[%s139 + $0x668] sm:$0xff]
      %v353 = vld [vmem:[%s139 + $0x670] sm:$0xff]
      %v354 = vld [vmem:[%s139 + $0x678] sm:$0xff]
      %v355 = vld [vmem:[%s139 + $0x680] sm:$0xff]
      %v356 = vld [vmem:[%s139 + $0x688] sm:$0xff]
      %v357 = vld [vmem:[%s139 + $0x690] sm:$0xff]
      %v358 = vld [vmem:[%s139 + $0x698] sm:$0xff]
      %v359 = vld [vmem:[%s139 + $0x6a0] sm:$0xff]
      %v360 = vld [vmem:[%s139 + $0x6a8] sm:$0xff]
      %v361 = vld [vmem:[%s139 + $0x6b0] sm:$0xff]
      %v362 = vld [vmem:[%s139 + $0x6b8] sm:$0xff]
      %v363 = vld [vmem:[%s139 + $0x6c0] sm:$0xff]
      %v364 = vld [vmem:[%s139 + $0x6c8] sm:$0xff]
      %v365 = vld [vmem:[%s139 + $0x6d0] sm:$0xff]
      %v366 = vld [vmem:[%s139 + $0x6d8] sm:$0xff]
      %v367 = vld [vmem:[%s139 + $0x6e0] sm:$0xff]
      %v368 = vld [vmem:[%s139 + $0x6e8] sm:$0xff]
      %v369 = vld [vmem:[%s139 + $0x6f0] sm:$0xff]
      %v370 = vld [vmem:[%s139 + $0x6f8] sm:$0xff]
      %v371 = vld [vmem:[%s139 + $0x700] sm:$0xff]
      %v372 = vld [vmem:[%s139 + $0x708] sm:$0xff]
      %v373 = vld [vmem:[%s139 + $0x710] sm:$0xff]
      %v374 = vld [vmem:[%s139 + $0x718] sm:$0xff]
      %v375 = vld [vmem:[%s139 + $0x720] sm:$0xff]
      %v376 = vld [vmem:[%s139 + $0x728] sm:$0xff]
      %v377 = vld [vmem:[%s139 + $0x730] sm:$0xff]
      %v378 = vld [vmem:[%s139 + $0x738] sm:$0xff]
      %v379 = vld [vmem:[%s139 + $0x740] sm:$0xff]
      %v380 = vld [vmem:[%s139 + $0x748] sm:$0xff]
      %v381 = vld [vmem:[%s139 + $0x750] sm:$0xff]
      %v382 = vld [vmem:[%s139 + $0x758] sm:$0xff]
      %v383 = vld [vmem:[%s139 + $0x760] sm:$0xff]
      %v384 = vld [vmem:[%s139 + $0x768] sm:$0xff]
      %v385 = vld [vmem:[%s139 + $0x770] sm:$0xff]
      %v386 = vld [vmem:[%s139 + $0x778] sm:$0xff]
      %v387 = vld [vmem:[%s139 + $0x780] sm:$0xff]
      %v388 = vld [vmem:[%s139 + $0x788] sm:$0xff]
      %v389 = vld [vmem:[%s139 + $0x790] sm:$0xff]
      %v390 = vld [vmem:[%s139 + $0x798] sm:$0xff]
      %v391 = vld [vmem:[%s139 + $0x7a0] sm:$0xff]
      %v392 = vld [vmem:[%s139 + $0x7a8] sm:$0xff]
      %v393 = vld [vmem:[%s139 + $0x7b0] sm:$0xff]
      %v394 = vld [vmem:[%s139 + $0x7b8] sm:$0xff]
      %v395 = vld [vmem:[%s139 + $0x7c0] sm:$0xff]
      %v396 = vld [vmem:[%s139 + $0x7c8] sm:$0xff]
      %v397 = vld [vmem:[%s139 + $0x7d0] sm:$0xff]
      %v398 = vld [vmem:[%s139 + $0x7d8] sm:$0xff]
      %v399 = vld [vmem:[%s139 + $0x7e0] sm:$0xff]
      %v400 = vld [vmem:[%s139 + $0x7e8] sm:$0xff]
      %v401 = vld [vmem:[%s139 + $0x7f0] sm:$0xff]
      %v402 = vld [vmem:[%s139 + $0x7f8] sm:$0xff]
      %v403 = vld [vmem:[%s1] sm:$0x1]
      %v405 = vlaneseq
      %v406 = vshrl.u32 %v405, 7
      %v407 = vsub.s32 0, %v406
      %v408 = vrot.slane %v403, %v407
      %v410 = vadd.f32 %v147, %v408
      %v411 = vadd.f32 %v148, %v408
      %v412 = vadd.f32 %v149, %v408
      %v413 = vadd.f32 %v150, %v408
      %v414 = vadd.f32 %v151, %v408
      %v415 = vadd.f32 %v152, %v408
      %v416 = vadd.f32 %v153, %v408
      %v417 = vadd.f32 %v154, %v408
      %v418 = vadd.f32 %v155, %v408
      %v419 = vadd.f32 %v156, %v408
      %v420 = vadd.f32 %v157, %v408
      %v421 = vadd.f32 %v158, %v408
      %v422 = vadd.f32 %v159, %v408
      %v423 = vadd.f32 %v160, %v408
      %v424 = vadd.f32 %v161, %v408
      %v425 = vadd.f32 %v162, %v408
      %v426 = vadd.f32 %v163, %v408
      %v427 = vadd.f32 %v164, %v408
      %v428 = vadd.f32 %v165, %v408
      %v429 = vadd.f32 %v166, %v408
      %v430 = vadd.f32 %v167, %v408
      %v431 = vadd.f32 %v168, %v408
      %v432 = vadd.f32 %v169, %v408
      %v433 = vadd.f32 %v170, %v408
      %v434 = vadd.f32 %v171, %v408
      %v435 = vadd.f32 %v172, %v408
      %v436 = vadd.f32 %v173, %v408
      %v437 = vadd.f32 %v174, %v408
      %v438 = vadd.f32 %v175, %v408
      %v439 = vadd.f32 %v176, %v408
      %v440 = vadd.f32 %v177, %v408
      %v441 = vadd.f32 %v178, %v408
      %v442 = vadd.f32 %v179, %v408
      %v443 = vadd.f32 %v180, %v408
      %v444 = vadd.f32 %v181, %v408
      %v445 = vadd.f32 %v182, %v408
      %v446 = vadd.f32 %v183, %v408
      %v447 = vadd.f32 %v184, %v408
      %v448 = vadd.f32 %v185, %v408
      %v449 = vadd.f32 %v186, %v408
      %v450 = vadd.f32 %v187, %v408
      %v451 = vadd.f32 %v188, %v408
      %v452 = vadd.f32 %v189, %v408
      %v453 = vadd.f32 %v190, %v408
      %v454 = vadd.f32 %v191, %v408
      %v455 = vadd.f32 %v192, %v408
      %v456 = vadd.f32 %v193, %v408
      %v457 = vadd.f32 %v194, %v408
      %v458 = vadd.f32 %v195, %v408
      %v459 = vadd.f32 %v196, %v408
      %v460 = vadd.f32 %v197, %v408
      %v461 = vadd.f32 %v198, %v408
      %v462 = vadd.f32 %v199, %v408
      %v463 = vadd.f32 %v200, %v408
      %v464 = vadd.f32 %v201, %v408
      %v465 = vadd.f32 %v202, %v408
      %v466 = vadd.f32 %v203, %v408
      %v467 = vadd.f32 %v204, %v408
      %v468 = vadd.f32 %v205, %v408
      %v469 = vadd.f32 %v206, %v408
      %v470 = vadd.f32 %v207, %v408
      %v471 = vadd.f32 %v208, %v408
      %v472 = vadd.f32 %v209, %v408
      %v473 = vadd.f32 %v210, %v408
      %v474 = vadd.f32 %v211, %v408
      %v475 = vadd.f32 %v212, %v408
      %v476 = vadd.f32 %v213, %v408
      %v477 = vadd.f32 %v214, %v408
      %v478 = vadd.f32 %v215, %v408
      %v479 = vadd.f32 %v216, %v408
      %v480 = vadd.f32 %v217, %v408
      %v481 = vadd.f32 %v218, %v408
      %v482 = vadd.f32 %v219, %v408
      %v483 = vadd.f32 %v220, %v408
      %v484 = vadd.f32 %v221, %v408
      %v485 = vadd.f32 %v222, %v408
      %v486 = vadd.f32 %v223, %v408
      %v487 = vadd.f32 %v224, %v408
      %v488 = vadd.f32 %v225, %v408
      %v489 = vadd.f32 %v226, %v408
      %v490 = vadd.f32 %v227, %v408
      %v491 = vadd.f32 %v228, %v408
      %v492 = vadd.f32 %v229, %v408
      %v493 = vadd.f32 %v230, %v408
      %v494 = vadd.f32 %v231, %v408
      %v495 = vadd.f32 %v232, %v408
      %v496 = vadd.f32 %v233, %v408
      %v497 = vadd.f32 %v234, %v408
      %v498 = vadd.f32 %v235, %v408
      %v499 = vadd.f32 %v236, %v408
      %v500 = vadd.f32 %v237, %v408
      %v501 = vadd.f32 %v238, %v408
      %v502 = vadd.f32 %v239, %v408
      %v503 = vadd.f32 %v240, %v408
      %v504 = vadd.f32 %v241, %v408
      %v505 = vadd.f32 %v242, %v408
      %v506 = vadd.f32 %v243, %v408
      %v507 = vadd.f32 %v244, %v408
      %v508 = vadd.f32 %v245, %v408
      %v509 = vadd.f32 %v246, %v408
      %v510 = vadd.f32 %v247, %v408
      %v511 = vadd.f32 %v248, %v408
      %v512 = vadd.f32 %v249, %v408
      %v513 = vadd.f32 %v250, %v408
      %v514 = vadd.f32 %v251, %v408
      %v515 = vadd.f32 %v252, %v408
      %v516 = vadd.f32 %v253, %v408
      %v517 = vadd.f32 %v254, %v408
      %v518 = vadd.f32 %v255, %v408
      %v519 = vadd.f32 %v256, %v408
      %v520 = vadd.f32 %v257, %v408
      %v521 = vadd.f32 %v258, %v408
      %v522 = vadd.f32 %v259, %v408
      %v523 = vadd.f32 %v260, %v408
      %v524 = vadd.f32 %v261, %v408
      %v525 = vadd.f32 %v262, %v408
      %v526 = vadd.f32 %v263, %v408
      %v527 = vadd.f32 %v264, %v408
      %v528 = vadd.f32 %v265, %v408
      %v529 = vadd.f32 %v266, %v408
      %v530 = vadd.f32 %v267, %v408
      %v531 = vadd.f32 %v268, %v408
      %v532 = vadd.f32 %v269, %v408
      %v533 = vadd.f32 %v270, %v408
      %v534 = vadd.f32 %v271, %v408
      %v535 = vadd.f32 %v272, %v408
      %v536 = vadd.f32 %v273, %v408
      %v537 = vadd.f32 %v274, %v408
      %v538 = vadd.f32 %v275, %v408
      %v539 = vadd.f32 %v276, %v408
      %v540 = vadd.f32 %v277, %v408
      %v541 = vadd.f32 %v278, %v408
      %v542 = vadd.f32 %v279, %v408
      %v543 = vadd.f32 %v280, %v408
      %v544 = vadd.f32 %v281, %v408
      %v545 = vadd.f32 %v282, %v408
      %v546 = vadd.f32 %v283, %v408
      %v547 = vadd.f32 %v284, %v408
      %v548 = vadd.f32 %v285, %v408
      %v549 = vadd.f32 %v286, %v408
      %v550 = vadd.f32 %v287, %v408
      %v551 = vadd.f32 %v288, %v408
      %v552 = vadd.f32 %v289, %v408
      %v553 = vadd.f32 %v290, %v408
      %v554 = vadd.f32 %v291, %v408
      %v555 = vadd.f32 %v292, %v408
      %v556 = vadd.f32 %v293, %v408
      %v557 = vadd.f32 %v294, %v408
      %v558 = vadd.f32 %v295, %v408
      %v559 = vadd.f32 %v296, %v408
      %v560 = vadd.f32 %v297, %v408
      %v561 = vadd.f32 %v298, %v408
      %v562 = vadd.f32 %v299, %v408
      %v563 = vadd.f32 %v300, %v408
      %v564 = vadd.f32 %v301, %v408
      %v565 = vadd.f32 %v302, %v408
      %v566 = vadd.f32 %v303, %v408
      %v567 = vadd.f32 %v304, %v408
      %v568 = vadd.f32 %v305, %v408
      %v569 = vadd.f32 %v306, %v408
      %v570 = vadd.f32 %v307, %v408
      %v571 = vadd.f32 %v308, %v408
      %v572 = vadd.f32 %v309, %v408
      %v573 = vadd.f32 %v310, %v408
      %v574 = vadd.f32 %v311, %v408
      %v575 = vadd.f32 %v312, %v408
      %v576 = vadd.f32 %v313, %v408
      %v577 = vadd.f32 %v314, %v408
      %v578 = vadd.f32 %v315, %v408
      %v579 = vadd.f32 %v316, %v408
      %v580 = vadd.f32 %v317, %v408
      %v581 = vadd.f32 %v318, %v408
      %v582 = vadd.f32 %v319, %v408
      %v583 = vadd.f32 %v320, %v408
      %v584 = vadd.f32 %v321, %v408
      %v585 = vadd.f32 %v322, %v408
      %v586 = vadd.f32 %v323, %v408
      %v587 = vadd.f32 %v324, %v408
      %v588 = vadd.f32 %v325, %v408
      %v589 = vadd.f32 %v326, %v408
      %v590 = vadd.f32 %v327, %v408
      %v591 = vadd.f32 %v328, %v408
      %v592 = vadd.f32 %v329, %v408
      %v593 = vadd.f32 %v330, %v408
      %v594 = vadd.f32 %v331, %v408
      %v595 = vadd.f32 %v332, %v408
      %v596 = vadd.f32 %v333, %v408
      %v597 = vadd.f32 %v334, %v408
      %v598 = vadd.f32 %v335, %v408
      %v599 = vadd.f32 %v336, %v408
      %v600 = vadd.f32 %v337, %v408
      %v601 = vadd.f32 %v338, %v408
      %v602 = vadd.f32 %v339, %v408
      %v603 = vadd.f32 %v340, %v408
      %v604 = vadd.f32 %v341, %v408
      %v605 = vadd.f32 %v342, %v408
      %v606 = vadd.f32 %v343, %v408
      %v607 = vadd.f32 %v344, %v408
      %v608 = vadd.f32 %v345, %v408
      %v609 = vadd.f32 %v346, %v408
      %v610 = vadd.f32 %v347, %v408
      %v611 = vadd.f32 %v348, %v408
      %v612 = vadd.f32 %v349, %v408
      %v613 = vadd.f32 %v350, %v408
      %v614 = vadd.f32 %v351, %v408
      %v615 = vadd.f32 %v352, %v408
      %v616 = vadd.f32 %v353, %v408
      %v617 = vadd.f32 %v354, %v408
      %v618 = vadd.f32 %v355, %v408
      %v619 = vadd.f32 %v356, %v408
      %v620 = vadd.f32 %v357, %v408
      %v621 = vadd.f32 %v358, %v408
      %v622 = vadd.f32 %v359, %v408
      %v623 = vadd.f32 %v360, %v408
      %v624 = vadd.f32 %v361, %v408
      %v625 = vadd.f32 %v362, %v408
      %v626 = vadd.f32 %v363, %v408
      %v627 = vadd.f32 %v364, %v408
      %v628 = vadd.f32 %v365, %v408
      %v629 = vadd.f32 %v366, %v408
      %v630 = vadd.f32 %v367, %v408
      %v631 = vadd.f32 %v368, %v408
      %v632 = vadd.f32 %v369, %v408
      %v633 = vadd.f32 %v370, %v408
      %v634 = vadd.f32 %v371, %v408
      %v635 = vadd.f32 %v372, %v408
      %v636 = vadd.f32 %v373, %v408
      %v637 = vadd.f32 %v374, %v408
      %v638 = vadd.f32 %v375, %v408
      %v639 = vadd.f32 %v376, %v408
      %v640 = vadd.f32 %v377, %v408
      %v641 = vadd.f32 %v378, %v408
      %v642 = vadd.f32 %v379, %v408
      %v643 = vadd.f32 %v380, %v408
      %v644 = vadd.f32 %v381, %v408
      %v645 = vadd.f32 %v382, %v408
      %v646 = vadd.f32 %v383, %v408
      %v647 = vadd.f32 %v384, %v408
      %v648 = vadd.f32 %v385, %v408
      %v649 = vadd.f32 %v386, %v408
      %v650 = vadd.f32 %v387, %v408
      %v651 = vadd.f32 %v388, %v408
      %v652 = vadd.f32 %v389, %v408
      %v653 = vadd.f32 %v390, %v408
      %v654 = vadd.f32 %v391, %v408
      %v655 = vadd.f32 %v392, %v408
      %v656 = vadd.f32 %v393, %v408
      %v657 = vadd.f32 %v394, %v408
      %v658 = vadd.f32 %v395, %v408
      %v659 = vadd.f32 %v396, %v408
      %v660 = vadd.f32 %v397, %v408
      %v661 = vadd.f32 %v398, %v408
      %v662 = vadd.f32 %v399, %v408
      %v663 = vadd.f32 %v400, %v408
      %v664 = vadd.f32 %v401, %v408
      %v665 = vadd.f32 %v402, %v408
      %v666 = vmax.f32 %v410, 0.0
      %v667 = vmax.f32 %v411, 0.0
      %v668 = vmax.f32 %v412, 0.0
      %v669 = vmax.f32 %v413, 0.0
      %v670 = vmax.f32 %v414, 0.0
      %v671 = vmax.f32 %v415, 0.0
      %v672 = vmax.f32 %v416, 0.0
      %v673 = vmax.f32 %v417, 0.0
      %v674 = vmax.f32 %v418, 0.0
      %v675 = vmax.f32 %v419, 0.0
      %v676 = vmax.f32 %v420, 0.0
      %v677 = vmax.f32 %v421, 0.0
      %v678 = vmax.f32 %v422, 0.0
      %v679 = vmax.f32 %v423, 0.0
      %v680 = vmax.f32 %v424, 0.0
      %v681 = vmax.f32 %v425, 0.0
      %v682 = vmax.f32 %v426, 0.0
      %v683 = vmax.f32 %v427, 0.0
      %v684 = vmax.f32 %v428, 0.0
      %v685 = vmax.f32 %v429, 0.0
      %v686 = vmax.f32 %v430, 0.0
      %v687 = vmax.f32 %v431, 0.0
      %v688 = vmax.f32 %v432, 0.0
      %v689 = vmax.f32 %v433, 0.0
      %v690 = vmax.f32 %v434, 0.0
      %v691 = vmax.f32 %v435, 0.0
      %v692 = vmax.f32 %v436, 0.0
      %v693 = vmax.f32 %v437, 0.0
      %v694 = vmax.f32 %v438, 0.0
      %v695 = vmax.f32 %v439, 0.0
      %v696 = vmax.f32 %v440, 0.0
      %v697 = vmax.f32 %v441, 0.0
      %v698 = vmax.f32 %v442, 0.0
      %v699 = vmax.f32 %v443, 0.0
      %v700 = vmax.f32 %v444, 0.0
      %v701 = vmax.f32 %v445, 0.0
      %v702 = vmax.f32 %v446, 0.0
      %v703 = vmax.f32 %v447, 0.0
      %v704 = vmax.f32 %v448, 0.0
      %v705 = vmax.f32 %v449, 0.0
      %v706 = vmax.f32 %v450, 0.0
      %v707 = vmax.f32 %v451, 0.0
      %v708 = vmax.f32 %v452, 0.0
      %v709 = vmax.f32 %v453, 0.0
      %v710 = vmax.f32 %v454, 0.0
      %v711 = vmax.f32 %v455, 0.0
      %v712 = vmax.f32 %v456, 0.0
      %v713 = vmax.f32 %v457, 0.0
      %v714 = vmax.f32 %v458, 0.0
      %v715 = vmax.f32 %v459, 0.0
      %v716 = vmax.f32 %v460, 0.0
      %v717 = vmax.f32 %v461, 0.0
      %v718 = vmax.f32 %v462, 0.0
      %v719 = vmax.f32 %v463, 0.0
      %v720 = vmax.f32 %v464, 0.0
      %v721 = vmax.f32 %v465, 0.0
      %v722 = vmax.f32 %v466, 0.0
      %v723 = vmax.f32 %v467, 0.0
      %v724 = vmax.f32 %v468, 0.0
      %v725 = vmax.f32 %v469, 0.0
      %v726 = vmax.f32 %v470, 0.0
      %v727 = vmax.f32 %v471, 0.0
      %v728 = vmax.f32 %v472, 0.0
      %v729 = vmax.f32 %v473, 0.0
      %v730 = vmax.f32 %v474, 0.0
      %v731 = vmax.f32 %v475, 0.0
      %v732 = vmax.f32 %v476, 0.0
      %v733 = vmax.f32 %v477, 0.0
      %v734 = vmax.f32 %v478, 0.0
      %v735 = vmax.f32 %v479, 0.0
      %v736 = vmax.f32 %v480, 0.0
      %v737 = vmax.f32 %v481, 0.0
      %v738 = vmax.f32 %v482, 0.0
      %v739 = vmax.f32 %v483, 0.0
      %v740 = vmax.f32 %v484, 0.0
      %v741 = vmax.f32 %v485, 0.0
      %v742 = vmax.f32 %v486, 0.0
      %v743 = vmax.f32 %v487, 0.0
      %v744 = vmax.f32 %v488, 0.0
      %v745 = vmax.f32 %v489, 0.0
      %v746 = vmax.f32 %v490, 0.0
      %v747 = vmax.f32 %v491, 0.0
      %v748 = vmax.f32 %v492, 0.0
      %v749 = vmax.f32 %v493, 0.0
      %v750 = vmax.f32 %v494, 0.0
      %v751 = vmax.f32 %v495, 0.0
      %v752 = vmax.f32 %v496, 0.0
      %v753 = vmax.f32 %v497, 0.0
      %v754 = vmax.f32 %v498, 0.0
      %v755 = vmax.f32 %v499, 0.0
      %v756 = vmax.f32 %v500, 0.0
      %v757 = vmax.f32 %v501, 0.0
      %v758 = vmax.f32 %v502, 0.0
      %v759 = vmax.f32 %v503, 0.0
      %v760 = vmax.f32 %v504, 0.0
      %v761 = vmax.f32 %v505, 0.0
      %v762 = vmax.f32 %v506, 0.0
      %v763 = vmax.f32 %v507, 0.0
      %v764 = vmax.f32 %v508, 0.0
      %v765 = vmax.f32 %v509, 0.0
      %v766 = vmax.f32 %v510, 0.0
      %v767 = vmax.f32 %v511, 0.0
      %v768 = vmax.f32 %v512, 0.0
      %v769 = vmax.f32 %v513, 0.0
      %v770 = vmax.f32 %v514, 0.0
      %v771 = vmax.f32 %v515, 0.0
      %v772 = vmax.f32 %v516, 0.0
      %v773 = vmax.f32 %v517, 0.0
      %v774 = vmax.f32 %v518, 0.0
      %v775 = vmax.f32 %v519, 0.0
      %v776 = vmax.f32 %v520, 0.0
      %v777 = vmax.f32 %v521, 0.0
      %v778 = vmax.f32 %v522, 0.0
      %v779 = vmax.f32 %v523, 0.0
      %v780 = vmax.f32 %v524, 0.0
      %v781 = vmax.f32 %v525, 0.0
      %v782 = vmax.f32 %v526, 0.0
      %v783 = vmax.f32 %v527, 0.0
      %v784 = vmax.f32 %v528, 0.0
      %v785 = vmax.f32 %v529, 0.0
      %v786 = vmax.f32 %v530, 0.0
      %v787 = vmax.f32 %v531, 0.0
      %v788 = vmax.f32 %v532, 0.0
      %v789 = vmax.f32 %v533, 0.0
      %v790 = vmax.f32 %v534, 0.0
      %v791 = vmax.f32 %v535, 0.0
      %v792 = vmax.f32 %v536, 0.0
      %v793 = vmax.f32 %v537, 0.0
      %v794 = vmax.f32 %v538, 0.0
      %v795 = vmax.f32 %v539, 0.0
      %v796 = vmax.f32 %v540, 0.0
      %v797 = vmax.f32 %v541, 0.0
      %v798 = vmax.f32 %v542, 0.0
      %v799 = vmax.f32 %v543, 0.0
      %v800 = vmax.f32 %v544, 0.0
      %v801 = vmax.f32 %v545, 0.0
      %v802 = vmax.f32 %v546, 0.0
      %v803 = vmax.f32 %v547, 0.0
      %v804 = vmax.f32 %v548, 0.0
      %v805 = vmax.f32 %v549, 0.0
      %v806 = vmax.f32 %v550, 0.0
      %v807 = vmax.f32 %v551, 0.0
      %v808 = vmax.f32 %v552, 0.0
      %v809 = vmax.f32 %v553, 0.0
      %v810 = vmax.f32 %v554, 0.0
      %v811 = vmax.f32 %v555, 0.0
      %v812 = vmax.f32 %v556, 0.0
      %v813 = vmax.f32 %v557, 0.0
      %v814 = vmax.f32 %v558, 0.0
      %v815 = vmax.f32 %v559, 0.0
      %v816 = vmax.f32 %v560, 0.0
      %v817 = vmax.f32 %v561, 0.0
      %v818 = vmax.f32 %v562, 0.0
      %v819 = vmax.f32 %v563, 0.0
      %v820 = vmax.f32 %v564, 0.0
      %v821 = vmax.f32 %v565, 0.0
      %v822 = vmax.f32 %v566, 0.0
      %v823 = vmax.f32 %v567, 0.0
      %v824 = vmax.f32 %v568, 0.0
      %v825 = vmax.f32 %v569, 0.0
      %v826 = vmax.f32 %v570, 0.0
      %v827 = vmax.f32 %v571, 0.0
      %v828 = vmax.f32 %v572, 0.0
      %v829 = vmax.f32 %v573, 0.0
      %v830 = vmax.f32 %v574, 0.0
      %v831 = vmax.f32 %v575, 0.0
      %v832 = vmax.f32 %v576, 0.0
      %v833 = vmax.f32 %v577, 0.0
      %v834 = vmax.f32 %v578, 0.0
      %v835 = vmax.f32 %v579, 0.0
      %v836 = vmax.f32 %v580, 0.0
      %v837 = vmax.f32 %v581, 0.0
      %v838 = vmax.f32 %v582, 0.0
      %v839 = vmax.f32 %v583, 0.0
      %v840 = vmax.f32 %v584, 0.0
      %v841 = vmax.f32 %v585, 0.0
      %v842 = vmax.f32 %v586, 0.0
      %v843 = vmax.f32 %v587, 0.0
      %v844 = vmax.f32 %v588, 0.0
      %v845 = vmax.f32 %v589, 0.0
      %v846 = vmax.f32 %v590, 0.0
      %v847 = vmax.f32 %v591, 0.0
      %v848 = vmax.f32 %v592, 0.0
      %v849 = vmax.f32 %v593, 0.0
      %v850 = vmax.f32 %v594, 0.0
      %v851 = vmax.f32 %v595, 0.0
      %v852 = vmax.f32 %v596, 0.0
      %v853 = vmax.f32 %v597, 0.0
      %v854 = vmax.f32 %v598, 0.0
      %v855 = vmax.f32 %v599, 0.0
      %v856 = vmax.f32 %v600, 0.0
      %v857 = vmax.f32 %v601, 0.0
      %v858 = vmax.f32 %v602, 0.0
      %v859 = vmax.f32 %v603, 0.0
      %v860 = vmax.f32 %v604, 0.0
      %v861 = vmax.f32 %v605, 0.0
      %v862 = vmax.f32 %v606, 0.0
      %v863 = vmax.f32 %v607, 0.0
      %v864 = vmax.f32 %v608, 0.0
      %v865 = vmax.f32 %v609, 0.0
      %v866 = vmax.f32 %v610, 0.0
      %v867 = vmax.f32 %v611, 0.0
      %v868 = vmax.f32 %v612, 0.0
      %v869 = vmax.f32 %v613, 0.0
      %v870 = vmax.f32 %v614, 0.0
      %v871 = vmax.f32 %v615, 0.0
      %v872 = vmax.f32 %v616, 0.0
      %v873 = vmax.f32 %v617, 0.0
      %v874 = vmax.f32 %v618, 0.0
      %v875 = vmax.f32 %v619, 0.0
      %v876 = vmax.f32 %v620, 0.0
      %v877 = vmax.f32 %v621, 0.0
      %v878 = vmax.f32 %v622, 0.0
      %v879 = vmax.f32 %v623, 0.0
      %v880 = vmax.f32 %v624, 0.0
      %v881 = vmax.f32 %v625, 0.0
      %v882 = vmax.f32 %v626, 0.0
      %v883 = vmax.f32 %v627, 0.0
      %v884 = vmax.f32 %v628, 0.0
      %v885 = vmax.f32 %v629, 0.0
      %v886 = vmax.f32 %v630, 0.0
      %v887 = vmax.f32 %v631, 0.0
      %v888 = vmax.f32 %v632, 0.0
      %v889 = vmax.f32 %v633, 0.0
      %v890 = vmax.f32 %v634, 0.0
      %v891 = vmax.f32 %v635, 0.0
      %v892 = vmax.f32 %v636, 0.0
      %v893 = vmax.f32 %v637, 0.0
      %v894 = vmax.f32 %v638, 0.0
      %v895 = vmax.f32 %v639, 0.0
      %v896 = vmax.f32 %v640, 0.0
      %v897 = vmax.f32 %v641, 0.0
      %v898 = vmax.f32 %v642, 0.0
      %v899 = vmax.f32 %v643, 0.0
      %v900 = vmax.f32 %v644, 0.0
      %v901 = vmax.f32 %v645, 0.0
      %v902 = vmax.f32 %v646, 0.0
      %v903 = vmax.f32 %v647, 0.0
      %v904 = vmax.f32 %v648, 0.0
      %v905 = vmax.f32 %v649, 0.0
      %v906 = vmax.f32 %v650, 0.0
      %v907 = vmax.f32 %v651, 0.0
      %v908 = vmax.f32 %v652, 0.0
      %v909 = vmax.f32 %v653, 0.0
      %v910 = vmax.f32 %v654, 0.0
      %v911 = vmax.f32 %v655, 0.0
      %v912 = vmax.f32 %v656, 0.0
      %v913 = vmax.f32 %v657, 0.0
      %v914 = vmax.f32 %v658, 0.0
      %v915 = vmax.f32 %v659, 0.0
      %v916 = vmax.f32 %v660, 0.0
      %v917 = vmax.f32 %v661, 0.0
      %v918 = vmax.f32 %v662, 0.0
      %v919 = vmax.f32 %v663, 0.0
      %v920 = vmax.f32 %v664, 0.0
      %v921 = vmax.f32 %v665, 0.0
      %v922 = vpack.c.bf16 %v667, %v666
      %v923 = vpack.c.bf16 %v669, %v668
      %v924 = vpack.c.bf16 %v671, %v670
      %v925 = vpack.c.bf16 %v673, %v672
      %v926 = vpack.c.bf16 %v675, %v674
      %v927 = vpack.c.bf16 %v677, %v676
      %v928 = vpack.c.bf16 %v679, %v678
      %v929 = vpack.c.bf16 %v681, %v680
      %v930 = vpack.c.bf16 %v683, %v682
      %v931 = vpack.c.bf16 %v685, %v684
      %v932 = vpack.c.bf16 %v687, %v686
      %v933 = vpack.c.bf16 %v689, %v688
      %v934 = vpack.c.bf16 %v691, %v690
      %v935 = vpack.c.bf16 %v693, %v692
      %v936 = vpack.c.bf16 %v695, %v694
      %v937 = vpack.c.bf16 %v697, %v696
      %v938 = vpack.c.bf16 %v699, %v698
      %v939 = vpack.c.bf16 %v701, %v700
      %v940 = vpack.c.bf16 %v703, %v702
      %v941 = vpack.c.bf16 %v705, %v704
      %v942 = vpack.c.bf16 %v707, %v706
      %v943 = vpack.c.bf16 %v709, %v708
      %v944 = vpack.c.bf16 %v711, %v710
      %v945 = vpack.c.bf16 %v713, %v712
      %v946 = vpack.c.bf16 %v715, %v714
      %v947 = vpack.c.bf16 %v717, %v716
      %v948 = vpack.c.bf16 %v719, %v718
      %v949 = vpack.c.bf16 %v721, %v720
      %v950 = vpack.c.bf16 %v723, %v722
      %v951 = vpack.c.bf16 %v725, %v724
      %v952 = vpack.c.bf16 %v727, %v726
      %v953 = vpack.c.bf16 %v729, %v728
      %v954 = vpack.c.bf16 %v731, %v730
      %v955 = vpack.c.bf16 %v733, %v732
      %v956 = vpack.c.bf16 %v735, %v734
      %v957 = vpack.c.bf16 %v737, %v736
      %v958 = vpack.c.bf16 %v739, %v738
      %v959 = vpack.c.bf16 %v741, %v740
      %v960 = vpack.c.bf16 %v743, %v742
      %v961 = vpack.c.bf16 %v745, %v744
      %v962 = vpack.c.bf16 %v747, %v746
      %v963 = vpack.c.bf16 %v749, %v748
      %v964 = vpack.c.bf16 %v751, %v750
      %v965 = vpack.c.bf16 %v753, %v752
      %v966 = vpack.c.bf16 %v755, %v754
      %v967 = vpack.c.bf16 %v757, %v756
      %v968 = vpack.c.bf16 %v759, %v758
      %v969 = vpack.c.bf16 %v761, %v760
      %v970 = vpack.c.bf16 %v763, %v762
      %v971 = vpack.c.bf16 %v765, %v764
      %v972 = vpack.c.bf16 %v767, %v766
      %v973 = vpack.c.bf16 %v769, %v768
      %v974 = vpack.c.bf16 %v771, %v770
      %v975 = vpack.c.bf16 %v773, %v772
      %v976 = vpack.c.bf16 %v775, %v774
      %v977 = vpack.c.bf16 %v777, %v776
      %v978 = vpack.c.bf16 %v779, %v778
      %v979 = vpack.c.bf16 %v781, %v780
      %v980 = vpack.c.bf16 %v783, %v782
      %v981 = vpack.c.bf16 %v785, %v784
      %v982 = vpack.c.bf16 %v787, %v786
      %v983 = vpack.c.bf16 %v789, %v788
      %v984 = vpack.c.bf16 %v791, %v790
      %v985 = vpack.c.bf16 %v793, %v792
      %v986 = vpack.c.bf16 %v795, %v794
      %v987 = vpack.c.bf16 %v797, %v796
      %v988 = vpack.c.bf16 %v799, %v798
      %v989 = vpack.c.bf16 %v801, %v800
      %v990 = vpack.c.bf16 %v803, %v802
      %v991 = vpack.c.bf16 %v805, %v804
      %v992 = vpack.c.bf16 %v807, %v806
      %v993 = vpack.c.bf16 %v809, %v808
      %v994 = vpack.c.bf16 %v811, %v810
      %v995 = vpack.c.bf16 %v813, %v812
      %v996 = vpack.c.bf16 %v815, %v814
      %v997 = vpack.c.bf16 %v817, %v816
      %v998 = vpack.c.bf16 %v819, %v818
      %v999 = vpack.c.bf16 %v821, %v820
      %v1000 = vpack.c.bf16 %v823, %v822
      %v1001 = vpack.c.bf16 %v825, %v824
      %v1002 = vpack.c.bf16 %v827, %v826
      %v1003 = vpack.c.bf16 %v829, %v828
      %v1004 = vpack.c.bf16 %v831, %v830
      %v1005 = vpack.c.bf16 %v833, %v832
      %v1006 = vpack.c.bf16 %v835, %v834
      %v1007 = vpack.c.bf16 %v837, %v836
      %v1008 = vpack.c.bf16 %v839, %v838
      %v1009 = vpack.c.bf16 %v841, %v840
      %v1010 = vpack.c.bf16 %v843, %v842
      %v1011 = vpack.c.bf16 %v845, %v844
      %v1012 = vpack.c.bf16 %v847, %v846
      %v1013 = vpack.c.bf16 %v849, %v848
      %v1014 = vpack.c.bf16 %v851, %v850
      %v1015 = vpack.c.bf16 %v853, %v852
      %v1016 = vpack.c.bf16 %v855, %v854
      %v1017 = vpack.c.bf16 %v857, %v856
      %v1018 = vpack.c.bf16 %v859, %v858
      %v1019 = vpack.c.bf16 %v861, %v860
      %v1020 = vpack.c.bf16 %v863, %v862
      %v1021 = vpack.c.bf16 %v865, %v864
      %v1022 = vpack.c.bf16 %v867, %v866
      %v1023 = vpack.c.bf16 %v869, %v868
      %v1024 = vpack.c.bf16 %v871, %v870
      %v1025 = vpack.c.bf16 %v873, %v872
      %v1026 = vpack.c.bf16 %v875, %v874
      %v1027 = vpack.c.bf16 %v877, %v876
      %v1028 = vpack.c.bf16 %v879, %v878
      %v1029 = vpack.c.bf16 %v881, %v880
      %v1030 = vpack.c.bf16 %v883, %v882
      %v1031 = vpack.c.bf16 %v885, %v884
      %v1032 = vpack.c.bf16 %v887, %v886
      %v1033 = vpack.c.bf16 %v889, %v888
      %v1034 = vpack.c.bf16 %v891, %v890
      %v1035 = vpack.c.bf16 %v893, %v892
      %v1036 = vpack.c.bf16 %v895, %v894
      %v1037 = vpack.c.bf16 %v897, %v896
      %v1038 = vpack.c.bf16 %v899, %v898
      %v1039 = vpack.c.bf16 %v901, %v900
      %v1040 = vpack.c.bf16 %v903, %v902
      %v1041 = vpack.c.bf16 %v905, %v904
      %v1042 = vpack.c.bf16 %v907, %v906
      %v1043 = vpack.c.bf16 %v909, %v908
      %v1044 = vpack.c.bf16 %v911, %v910
      %v1045 = vpack.c.bf16 %v913, %v912
      %v1046 = vpack.c.bf16 %v915, %v914
      %v1047 = vpack.c.bf16 %v917, %v916
      %v1048 = vpack.c.bf16 %v919, %v918
      %v1049 = vpack.c.bf16 %v921, %v920
      %v1178 = vunpack.c.l.b16 %v922
      %v1179 = vunpack.c.h.b16 %v922
      %v1180 = vunpack.c.l.b16 %v923
      %v1181 = vunpack.c.h.b16 %v923
      %v1182 = vunpack.c.l.b16 %v924
      %v1183 = vunpack.c.h.b16 %v924
      %v1184 = vunpack.c.l.b16 %v925
      %v1185 = vunpack.c.h.b16 %v925
      %v1186 = vunpack.c.l.b16 %v926
      %v1187 = vunpack.c.h.b16 %v926
      %v1188 = vunpack.c.l.b16 %v927
      %v1189 = vunpack.c.h.b16 %v927
      %v1190 = vunpack.c.l.b16 %v928
      %v1191 = vunpack.c.h.b16 %v928
      %v1192 = vunpack.c.l.b16 %v929
      %v1193 = vunpack.c.h.b16 %v929
      %v1194 = vunpack.c.l.b16 %v930
      %v1195 = vunpack.c.h.b16 %v930
      %v1196 = vunpack.c.l.b16 %v931
      %v1197 = vunpack.c.h.b16 %v931
      %v1198 = vunpack.c.l.b16 %v932
      %v1199 = vunpack.c.h.b16 %v932
      %v1200 = vunpack.c.l.b16 %v933
      %v1201 = vunpack.c.h.b16 %v933
      %v1202 = vunpack.c.l.b16 %v934
      %v1203 = vunpack.c.h.b16 %v934
      %v1204 = vunpack.c.l.b16 %v935
      %v1205 = vunpack.c.h.b16 %v935
      %v1206 = vunpack.c.l.b16 %v936
      %v1207 = vunpack.c.h.b16 %v936
      %v1208 = vunpack.c.l.b16 %v937
      %v1209 = vunpack.c.h.b16 %v937
      %v1210 = vunpack.c.l.b16 %v938
      %v1211 = vunpack.c.h.b16 %v938
      %v1212 = vunpack.c.l.b16 %v939
      %v1213 = vunpack.c.h.b16 %v939
      %v1214 = vunpack.c.l.b16 %v940
      %v1215 = vunpack.c.h.b16 %v940
      %v1216 = vunpack.c.l.b16 %v941
      %v1217 = vunpack.c.h.b16 %v941
      %v1218 = vunpack.c.l.b16 %v942
      %v1219 = vunpack.c.h.b16 %v942
      %v1220 = vunpack.c.l.b16 %v943
      %v1221 = vunpack.c.h.b16 %v943
      %v1222 = vunpack.c.l.b16 %v944
      %v1223 = vunpack.c.h.b16 %v944
      %v1224 = vunpack.c.l.b16 %v945
      %v1225 = vunpack.c.h.b16 %v945
      %v1226 = vunpack.c.l.b16 %v946
      %v1227 = vunpack.c.h.b16 %v946
      %v1228 = vunpack.c.l.b16 %v947
      %v1229 = vunpack.c.h.b16 %v947
      %v1230 = vunpack.c.l.b16 %v948
      %v1231 = vunpack.c.h.b16 %v948
      %v1232 = vunpack.c.l.b16 %v949
      %v1233 = vunpack.c.h.b16 %v949
      %v1234 = vunpack.c.l.b16 %v950
      %v1235 = vunpack.c.h.b16 %v950
      %v1236 = vunpack.c.l.b16 %v951
      %v1237 = vunpack.c.h.b16 %v951
      %v1238 = vunpack.c.l.b16 %v952
      %v1239 = vunpack.c.h.b16 %v952
      %v1240 = vunpack.c.l.b16 %v953
      %v1241 = vunpack.c.h.b16 %v953
      %v1242 = vunpack.c.l.b16 %v954
      %v1243 = vunpack.c.h.b16 %v954
      %v1244 = vunpack.c.l.b16 %v955
      %v1245 = vunpack.c.h.b16 %v955
      %v1246 = vunpack.c.l.b16 %v956
      %v1247 = vunpack.c.h.b16 %v956
      %v1248 = vunpack.c.l.b16 %v957
      %v1249 = vunpack.c.h.b16 %v957
      %v1250 = vunpack.c.l.b16 %v958
      %v1251 = vunpack.c.h.b16 %v958
      %v1252 = vunpack.c.l.b16 %v959
      %v1253 = vunpack.c.h.b16 %v959
      %v1254 = vunpack.c.l.b16 %v960
      %v1255 = vunpack.c.h.b16 %v960
      %v1256 = vunpack.c.l.b16 %v961
      %v1257 = vunpack.c.h.b16 %v961
      %v1258 = vunpack.c.l.b16 %v962
      %v1259 = vunpack.c.h.b16 %v962
      %v1260 = vunpack.c.l.b16 %v963
      %v1261 = vunpack.c.h.b16 %v963
      %v1262 = vunpack.c.l.b16 %v964
      %v1263 = vunpack.c.h.b16 %v964
      %v1264 = vunpack.c.l.b16 %v965
      %v1265 = vunpack.c.h.b16 %v965
      %v1266 = vunpack.c.l.b16 %v966
      %v1267 = vunpack.c.h.b16 %v966
      %v1268 = vunpack.c.l.b16 %v967
      %v1269 = vunpack.c.h.b16 %v967
      %v1270 = vunpack.c.l.b16 %v968
      %v1271 = vunpack.c.h.b16 %v968
      %v1272 = vunpack.c.l.b16 %v969
      %v1273 = vunpack.c.h.b16 %v969
      %v1274 = vunpack.c.l.b16 %v970
      %v1275 = vunpack.c.h.b16 %v970
      %v1276 = vunpack.c.l.b16 %v971
      %v1277 = vunpack.c.h.b16 %v971
      %v1278 = vunpack.c.l.b16 %v972
      %v1279 = vunpack.c.h.b16 %v972
      %v1280 = vunpack.c.l.b16 %v973
      %v1281 = vunpack.c.h.b16 %v973
      %v1282 = vunpack.c.l.b16 %v974
      %v1283 = vunpack.c.h.b16 %v974
      %v1284 = vunpack.c.l.b16 %v975
      %v1285 = vunpack.c.h.b16 %v975
      %v1286 = vunpack.c.l.b16 %v976
      %v1287 = vunpack.c.h.b16 %v976
      %v1288 = vunpack.c.l.b16 %v977
      %v1289 = vunpack.c.h.b16 %v977
      %v1290 = vunpack.c.l.b16 %v978
      %v1291 = vunpack.c.h.b16 %v978
      %v1292 = vunpack.c.l.b16 %v979
      %v1293 = vunpack.c.h.b16 %v979
      %v1294 = vunpack.c.l.b16 %v980
      %v1295 = vunpack.c.h.b16 %v980
      %v1296 = vunpack.c.l.b16 %v981
      %v1297 = vunpack.c.h.b16 %v981
      %v1298 = vunpack.c.l.b16 %v982
      %v1299 = vunpack.c.h.b16 %v982
      %v1300 = vunpack.c.l.b16 %v983
      %v1301 = vunpack.c.h.b16 %v983
      %v1302 = vunpack.c.l.b16 %v984
      %v1303 = vunpack.c.h.b16 %v984
      %v1304 = vunpack.c.l.b16 %v985
      %v1305 = vunpack.c.h.b16 %v985
      %v1306 = vunpack.c.l.b16 %v986
      %v1307 = vunpack.c.h.b16 %v986
      %v1308 = vunpack.c.l.b16 %v987
      %v1309 = vunpack.c.h.b16 %v987
      %v1310 = vunpack.c.l.b16 %v988
      %v1311 = vunpack.c.h.b16 %v988
      %v1312 = vunpack.c.l.b16 %v989
      %v1313 = vunpack.c.h.b16 %v989
      %v1314 = vunpack.c.l.b16 %v990
      %v1315 = vunpack.c.h.b16 %v990
      %v1316 = vunpack.c.l.b16 %v991
      %v1317 = vunpack.c.h.b16 %v991
      %v1318 = vunpack.c.l.b16 %v992
      %v1319 = vunpack.c.h.b16 %v992
      %v1320 = vunpack.c.l.b16 %v993
      %v1321 = vunpack.c.h.b16 %v993
      %v1322 = vunpack.c.l.b16 %v994
      %v1323 = vunpack.c.h.b16 %v994
      %v1324 = vunpack.c.l.b16 %v995
      %v1325 = vunpack.c.h.b16 %v995
      %v1326 = vunpack.c.l.b16 %v996
      %v1327 = vunpack.c.h.b16 %v996
      %v1328 = vunpack.c.l.b16 %v997
      %v1329 = vunpack.c.h.b16 %v997
      %v1330 = vunpack.c.l.b16 %v998
      %v1331 = vunpack.c.h.b16 %v998
      %v1332 = vunpack.c.l.b16 %v999
      %v1333 = vunpack.c.h.b16 %v999
      %v1334 = vunpack.c.l.b16 %v1000
      %v1335 = vunpack.c.h.b16 %v1000
      %v1336 = vunpack.c.l.b16 %v1001
      %v1337 = vunpack.c.h.b16 %v1001
      %v1338 = vunpack.c.l.b16 %v1002
      %v1339 = vunpack.c.h.b16 %v1002
      %v1340 = vunpack.c.l.b16 %v1003
      %v1341 = vunpack.c.h.b16 %v1003
      %v1342 = vunpack.c.l.b16 %v1004
      %v1343 = vunpack.c.h.b16 %v1004
      %v1344 = vunpack.c.l.b16 %v1005
      %v1345 = vunpack.c.h.b16 %v1005
      %v1346 = vunpack.c.l.b16 %v1006
      %v1347 = vunpack.c.h.b16 %v1006
      %v1348 = vunpack.c.l.b16 %v1007
      %v1349 = vunpack.c.h.b16 %v1007
      %v1350 = vunpack.c.l.b16 %v1008
      %v1351 = vunpack.c.h.b16 %v1008
      %v1352 = vunpack.c.l.b16 %v1009
      %v1353 = vunpack.c.h.b16 %v1009
      %v1354 = vunpack.c.l.b16 %v1010
      %v1355 = vunpack.c.h.b16 %v1010
      %v1356 = vunpack.c.l.b16 %v1011
      %v1357 = vunpack.c.h.b16 %v1011
      %v1358 = vunpack.c.l.b16 %v1012
      %v1359 = vunpack.c.h.b16 %v1012
      %v1360 = vunpack.c.l.b16 %v1013
      %v1361 = vunpack.c.h.b16 %v1013
      %v1362 = vunpack.c.l.b16 %v1014
      %v1363 = vunpack.c.h.b16 %v1014
      %v1364 = vunpack.c.l.b16 %v1015
      %v1365 = vunpack.c.h.b16 %v1015
      %v1366 = vunpack.c.l.b16 %v1016
      %v1367 = vunpack.c.h.b16 %v1016
      %v1368 = vunpack.c.l.b16 %v1017
      %v1369 = vunpack.c.h.b16 %v1017
      %v1370 = vunpack.c.l.b16 %v1018
      %v1371 = vunpack.c.h.b16 %v1018
      %v1372 = vunpack.c.l.b16 %v1019
      %v1373 = vunpack.c.h.b16 %v1019
      %v1374 = vunpack.c.l.b16 %v1020
      %v1375 = vunpack.c.h.b16 %v1020
      %v1376 = vunpack.c.l.b16 %v1021
      %v1377 = vunpack.c.h.b16 %v1021
      %v1378 = vunpack.c.l.b16 %v1022
      %v1379 = vunpack.c.h.b16 %v1022
      %v1380 = vunpack.c.l.b16 %v1023
      %v1381 = vunpack.c.h.b16 %v1023
      %v1382 = vunpack.c.l.b16 %v1024
      %v1383 = vunpack.c.h.b16 %v1024
      %v1384 = vunpack.c.l.b16 %v1025
      %v1385 = vunpack.c.h.b16 %v1025
      %v1386 = vunpack.c.l.b16 %v1026
      %v1387 = vunpack.c.h.b16 %v1026
      %v1388 = vunpack.c.l.b16 %v1027
      %v1389 = vunpack.c.h.b16 %v1027
      %v1390 = vunpack.c.l.b16 %v1028
      %v1391 = vunpack.c.h.b16 %v1028
      %v1392 = vunpack.c.l.b16 %v1029
      %v1393 = vunpack.c.h.b16 %v1029
      %v1394 = vunpack.c.l.b16 %v1030
      %v1395 = vunpack.c.h.b16 %v1030
      %v1396 = vunpack.c.l.b16 %v1031
      %v1397 = vunpack.c.h.b16 %v1031
      %v1398 = vunpack.c.l.b16 %v1032
      %v1399 = vunpack.c.h.b16 %v1032
      %v1400 = vunpack.c.l.b16 %v1033
      %v1401 = vunpack.c.h.b16 %v1033
      %v1402 = vunpack.c.l.b16 %v1034
      %v1403 = vunpack.c.h.b16 %v1034
      %v1404 = vunpack.c.l.b16 %v1035
      %v1405 = vunpack.c.h.b16 %v1035
      %v1406 = vunpack.c.l.b16 %v1036
      %v1407 = vunpack.c.h.b16 %v1036
      %v1408 = vunpack.c.l.b16 %v1037
      %v1409 = vunpack.c.h.b16 %v1037
      %v1410 = vunpack.c.l.b16 %v1038
      %v1411 = vunpack.c.h.b16 %v1038
      %v1412 = vunpack.c.l.b16 %v1039
      %v1413 = vunpack.c.h.b16 %v1039
      %v1414 = vunpack.c.l.b16 %v1040
      %v1415 = vunpack.c.h.b16 %v1040
      %v1416 = vunpack.c.l.b16 %v1041
      %v1417 = vunpack.c.h.b16 %v1041
      %v1418 = vunpack.c.l.b16 %v1042
      %v1419 = vunpack.c.h.b16 %v1042
      %v1420 = vunpack.c.l.b16 %v1043
      %v1421 = vunpack.c.h.b16 %v1043
      %v1422 = vunpack.c.l.b16 %v1044
      %v1423 = vunpack.c.h.b16 %v1044
      %v1424 = vunpack.c.l.b16 %v1045
      %v1425 = vunpack.c.h.b16 %v1045
      %v1426 = vunpack.c.l.b16 %v1046
      %v1427 = vunpack.c.h.b16 %v1046
      %v1428 = vunpack.c.l.b16 %v1047
      %v1429 = vunpack.c.h.b16 %v1047
      %v1430 = vunpack.c.l.b16 %v1048
      %v1431 = vunpack.c.h.b16 %v1048
      %v1432 = vunpack.c.l.b16 %v1049
      %v1433 = vunpack.c.h.b16 %v1049
      %v1434 = vpack.c.b16 %v1178, %v1178
      %v1435 = vpack.c.b16 %v1179, %v1179
      %v1436 = vpack.c.b16 %v1180, %v1180
      %v1437 = vpack.c.b16 %v1181, %v1181
      %v1438 = vpack.c.b16 %v1182, %v1182
      %v1439 = vpack.c.b16 %v1183, %v1183
      %v1440 = vpack.c.b16 %v1184, %v1184
      %v1441 = vpack.c.b16 %v1185, %v1185
      %v1442 = vpack.c.b16 %v1186, %v1186
      %v1443 = vpack.c.b16 %v1187, %v1187
      %v1444 = vpack.c.b16 %v1188, %v1188
      %v1445 = vpack.c.b16 %v1189, %v1189
      %v1446 = vpack.c.b16 %v1190, %v1190
      %v1447 = vpack.c.b16 %v1191, %v1191
      %v1448 = vpack.c.b16 %v1192, %v1192
      %v1449 = vpack.c.b16 %v1193, %v1193
      %v1450 = vpack.c.b16 %v1194, %v1194
      %v1451 = vpack.c.b16 %v1195, %v1195
      %v1452 = vpack.c.b16 %v1196, %v1196
      %v1453 = vpack.c.b16 %v1197, %v1197
      %v1454 = vpack.c.b16 %v1198, %v1198
      %v1455 = vpack.c.b16 %v1199, %v1199
      %v1456 = vpack.c.b16 %v1200, %v1200
      %v1457 = vpack.c.b16 %v1201, %v1201
      %v1458 = vpack.c.b16 %v1202, %v1202
      %v1459 = vpack.c.b16 %v1203, %v1203
      %v1460 = vpack.c.b16 %v1204, %v1204
      %v1461 = vpack.c.b16 %v1205, %v1205
      %v1462 = vpack.c.b16 %v1206, %v1206
      %v1463 = vpack.c.b16 %v1207, %v1207
      %v1464 = vpack.c.b16 %v1208, %v1208
      %v1465 = vpack.c.b16 %v1209, %v1209
      %v1466 = vpack.c.b16 %v1210, %v1210
      %v1467 = vpack.c.b16 %v1211, %v1211
      %v1468 = vpack.c.b16 %v1212, %v1212
      %v1469 = vpack.c.b16 %v1213, %v1213
      %v1470 = vpack.c.b16 %v1214, %v1214
      %v1471 = vpack.c.b16 %v1215, %v1215
      %v1472 = vpack.c.b16 %v1216, %v1216
      %v1473 = vpack.c.b16 %v1217, %v1217
      %v1474 = vpack.c.b16 %v1218, %v1218
      %v1475 = vpack.c.b16 %v1219, %v1219
      %v1476 = vpack.c.b16 %v1220, %v1220
      %v1477 = vpack.c.b16 %v1221, %v1221
      %v1478 = vpack.c.b16 %v1222, %v1222
      %v1479 = vpack.c.b16 %v1223, %v1223
      %v1480 = vpack.c.b16 %v1224, %v1224
      %v1481 = vpack.c.b16 %v1225, %v1225
      %v1482 = vpack.c.b16 %v1226, %v1226
      %v1483 = vpack.c.b16 %v1227, %v1227
      %v1484 = vpack.c.b16 %v1228, %v1228
      %v1485 = vpack.c.b16 %v1229, %v1229
      %v1486 = vpack.c.b16 %v1230, %v1230
      %v1487 = vpack.c.b16 %v1231, %v1231
      %v1488 = vpack.c.b16 %v1232, %v1232
      %v1489 = vpack.c.b16 %v1233, %v1233
      %v1490 = vpack.c.b16 %v1234, %v1234
      %v1491 = vpack.c.b16 %v1235, %v1235
      %v1492 = vpack.c.b16 %v1236, %v1236
      %v1493 = vpack.c.b16 %v1237, %v1237
      %v1494 = vpack.c.b16 %v1238, %v1238
      %v1495 = vpack.c.b16 %v1239, %v1239
      %v1496 = vpack.c.b16 %v1240, %v1240
      %v1497 = vpack.c.b16 %v1241, %v1241
      %v1498 = vpack.c.b16 %v1242, %v1242
      %v1499 = vpack.c.b16 %v1243, %v1243
      %v1500 = vpack.c.b16 %v1244, %v1244
      %v1501 = vpack.c.b16 %v1245, %v1245
      %v1502 = vpack.c.b16 %v1246, %v1246
      %v1503 = vpack.c.b16 %v1247, %v1247
      %v1504 = vpack.c.b16 %v1248, %v1248
      %v1505 = vpack.c.b16 %v1249, %v1249
      %v1506 = vpack.c.b16 %v1250, %v1250
      %v1507 = vpack.c.b16 %v1251, %v1251
      %v1508 = vpack.c.b16 %v1252, %v1252
      %v1509 = vpack.c.b16 %v1253, %v1253
      %v1510 = vpack.c.b16 %v1254, %v1254
      %v1511 = vpack.c.b16 %v1255, %v1255
      %v1512 = vpack.c.b16 %v1256, %v1256
      %v1513 = vpack.c.b16 %v1257, %v1257
      %v1514 = vpack.c.b16 %v1258, %v1258
      %v1515 = vpack.c.b16 %v1259, %v1259
      %v1516 = vpack.c.b16 %v1260, %v1260
      %v1517 = vpack.c.b16 %v1261, %v1261
      %v1518 = vpack.c.b16 %v1262, %v1262
      %v1519 = vpack.c.b16 %v1263, %v1263
      %v1520 = vpack.c.b16 %v1264, %v1264
      %v1521 = vpack.c.b16 %v1265, %v1265
      %v1522 = vpack.c.b16 %v1266, %v1266
      %v1523 = vpack.c.b16 %v1267, %v1267
      %v1524 = vpack.c.b16 %v1268, %v1268
      %v1525 = vpack.c.b16 %v1269, %v1269
      %v1526 = vpack.c.b16 %v1270, %v1270
      %v1527 = vpack.c.b16 %v1271, %v1271
      %v1528 = vpack.c.b16 %v1272, %v1272
      %v1529 = vpack.c.b16 %v1273, %v1273
      %v1530 = vpack.c.b16 %v1274, %v1274
      %v1531 = vpack.c.b16 %v1275, %v1275
      %v1532 = vpack.c.b16 %v1276, %v1276
      %v1533 = vpack.c.b16 %v1277, %v1277
      %v1534 = vpack.c.b16 %v1278, %v1278
      %v1535 = vpack.c.b16 %v1279, %v1279
      %v1536 = vpack.c.b16 %v1280, %v1280
      %v1537 = vpack.c.b16 %v1281, %v1281
      %v1538 = vpack.c.b16 %v1282, %v1282
      %v1539 = vpack.c.b16 %v1283, %v1283
      %v1540 = vpack.c.b16 %v1284, %v1284
      %v1541 = vpack.c.b16 %v1285, %v1285
      %v1542 = vpack.c.b16 %v1286, %v1286
      %v1543 = vpack.c.b16 %v1287, %v1287
      %v1544 = vpack.c.b16 %v1288, %v1288
      %v1545 = vpack.c.b16 %v1289, %v1289
      %v1546 = vpack.c.b16 %v1290, %v1290
      %v1547 = vpack.c.b16 %v1291, %v1291
      %v1548 = vpack.c.b16 %v1292, %v1292
      %v1549 = vpack.c.b16 %v1293, %v1293
      %v1550 = vpack.c.b16 %v1294, %v1294
      %v1551 = vpack.c.b16 %v1295, %v1295
      %v1552 = vpack.c.b16 %v1296, %v1296
      %v1553 = vpack.c.b16 %v1297, %v1297
      %v1554 = vpack.c.b16 %v1298, %v1298
      %v1555 = vpack.c.b16 %v1299, %v1299
      %v1556 = vpack.c.b16 %v1300, %v1300
      %v1557 = vpack.c.b16 %v1301, %v1301
      %v1558 = vpack.c.b16 %v1302, %v1302
      %v1559 = vpack.c.b16 %v1303, %v1303
      %v1560 = vpack.c.b16 %v1304, %v1304
      %v1561 = vpack.c.b16 %v1305, %v1305
      %v1562 = vpack.c.b16 %v1306, %v1306
      %v1563 = vpack.c.b16 %v1307, %v1307
      %v1564 = vpack.c.b16 %v1308, %v1308
      %v1565 = vpack.c.b16 %v1309, %v1309
      %v1566 = vpack.c.b16 %v1310, %v1310
      %v1567 = vpack.c.b16 %v1311, %v1311
      %v1568 = vpack.c.b16 %v1312, %v1312
      %v1569 = vpack.c.b16 %v1313, %v1313
      %v1570 = vpack.c.b16 %v1314, %v1314
      %v1571 = vpack.c.b16 %v1315, %v1315
      %v1572 = vpack.c.b16 %v1316, %v1316
      %v1573 = vpack.c.b16 %v1317, %v1317
      %v1574 = vpack.c.b16 %v1318, %v1318
      %v1575 = vpack.c.b16 %v1319, %v1319
      %v1576 = vpack.c.b16 %v1320, %v1320
      %v1577 = vpack.c.b16 %v1321, %v1321
      %v1578 = vpack.c.b16 %v1322, %v1322
      %v1579 = vpack.c.b16 %v1323, %v1323
      %v1580 = vpack.c.b16 %v1324, %v1324
      %v1581 = vpack.c.b16 %v1325, %v1325
      %v1582 = vpack.c.b16 %v1326, %v1326
      %v1583 = vpack.c.b16 %v1327, %v1327
      %v1584 = vpack.c.b16 %v1328, %v1328
      %v1585 = vpack.c.b16 %v1329, %v1329
      %v1586 = vpack.c.b16 %v1330, %v1330
      %v1587 = vpack.c.b16 %v1331, %v1331
      %v1588 = vpack.c.b16 %v1332, %v1332
      %v1589 = vpack.c.b16 %v1333, %v1333
      %v1590 = vpack.c.b16 %v1334, %v1334
      %v1591 = vpack.c.b16 %v1335, %v1335
      %v1592 = vpack.c.b16 %v1336, %v1336
      %v1593 = vpack.c.b16 %v1337, %v1337
      %v1594 = vpack.c.b16 %v1338, %v1338
      %v1595 = vpack.c.b16 %v1339, %v1339
      %v1596 = vpack.c.b16 %v1340, %v1340
      %v1597 = vpack.c.b16 %v1341, %v1341
      %v1598 = vpack.c.b16 %v1342, %v1342
      %v1599 = vpack.c.b16 %v1343, %v1343
      %v1600 = vpack.c.b16 %v1344, %v1344
      %v1601 = vpack.c.b16 %v1345, %v1345
      %v1602 = vpack.c.b16 %v1346, %v1346
      %v1603 = vpack.c.b16 %v1347, %v1347
      %v1604 = vpack.c.b16 %v1348, %v1348
      %v1605 = vpack.c.b16 %v1349, %v1349
      %v1606 = vpack.c.b16 %v1350, %v1350
      %v1607 = vpack.c.b16 %v1351, %v1351
      %v1608 = vpack.c.b16 %v1352, %v1352
      %v1609 = vpack.c.b16 %v1353, %v1353
      %v1610 = vpack.c.b16 %v1354, %v1354
      %v1611 = vpack.c.b16 %v1355, %v1355
      %v1612 = vpack.c.b16 %v1356, %v1356
      %v1613 = vpack.c.b16 %v1357, %v1357
      %v1614 = vpack.c.b16 %v1358, %v1358
      %v1615 = vpack.c.b16 %v1359, %v1359
      %v1616 = vpack.c.b16 %v1360, %v1360
      %v1617 = vpack.c.b16 %v1361, %v1361
      %v1618 = vpack.c.b16 %v1362, %v1362
      %v1619 = vpack.c.b16 %v1363, %v1363
      %v1620 = vpack.c.b16 %v1364, %v1364
      %v1621 = vpack.c.b16 %v1365, %v1365
      %v1622 = vpack.c.b16 %v1366, %v1366
      %v1623 = vpack.c.b16 %v1367, %v1367
      %v1624 = vpack.c.b16 %v1368, %v1368
      %v1625 = vpack.c.b16 %v1369, %v1369
      %v1626 = vpack.c.b16 %v1370, %v1370
      %v1627 = vpack.c.b16 %v1371, %v1371
      %v1628 = vpack.c.b16 %v1372, %v1372
      %v1629 = vpack.c.b16 %v1373, %v1373
      %v1630 = vpack.c.b16 %v1374, %v1374
      %v1631 = vpack.c.b16 %v1375, %v1375
      %v1632 = vpack.c.b16 %v1376, %v1376
      %v1633 = vpack.c.b16 %v1377, %v1377
      %v1634 = vpack.c.b16 %v1378, %v1378
      %v1635 = vpack.c.b16 %v1379, %v1379
      %v1636 = vpack.c.b16 %v1380, %v1380
      %v1637 = vpack.c.b16 %v1381, %v1381
      %v1638 = vpack.c.b16 %v1382, %v1382
      %v1639 = vpack.c.b16 %v1383, %v1383
      %v1640 = vpack.c.b16 %v1384, %v1384
      %v1641 = vpack.c.b16 %v1385, %v1385
      %v1642 = vpack.c.b16 %v1386, %v1386
      %v1643 = vpack.c.b16 %v1387, %v1387
      %v1644 = vpack.c.b16 %v1388, %v1388
      %v1645 = vpack.c.b16 %v1389, %v1389
      %v1646 = vpack.c.b16 %v1390, %v1390
      %v1647 = vpack.c.b16 %v1391, %v1391
      %v1648 = vpack.c.b16 %v1392, %v1392
      %v1649 = vpack.c.b16 %v1393, %v1393
      %v1650 = vpack.c.b16 %v1394, %v1394
      %v1651 = vpack.c.b16 %v1395, %v1395
      %v1652 = vpack.c.b16 %v1396, %v1396
      %v1653 = vpack.c.b16 %v1397, %v1397
      %v1654 = vpack.c.b16 %v1398, %v1398
      %v1655 = vpack.c.b16 %v1399, %v1399
      %v1656 = vpack.c.b16 %v1400, %v1400
      %v1657 = vpack.c.b16 %v1401, %v1401
      %v1658 = vpack.c.b16 %v1402, %v1402
      %v1659 = vpack.c.b16 %v1403, %v1403
      %v1660 = vpack.c.b16 %v1404, %v1404
      %v1661 = vpack.c.b16 %v1405, %v1405
      %v1662 = vpack.c.b16 %v1406, %v1406
      %v1663 = vpack.c.b16 %v1407, %v1407
      %v1664 = vpack.c.b16 %v1408, %v1408
      %v1665 = vpack.c.b16 %v1409, %v1409
      %v1666 = vpack.c.b16 %v1410, %v1410
      %v1667 = vpack.c.b16 %v1411, %v1411
      %v1668 = vpack.c.b16 %v1412, %v1412
      %v1669 = vpack.c.b16 %v1413, %v1413
      %v1670 = vpack.c.b16 %v1414, %v1414
      %v1671 = vpack.c.b16 %v1415, %v1415
      %v1672 = vpack.c.b16 %v1416, %v1416
      %v1673 = vpack.c.b16 %v1417, %v1417
      %v1674 = vpack.c.b16 %v1418, %v1418
      %v1675 = vpack.c.b16 %v1419, %v1419
      %v1676 = vpack.c.b16 %v1420, %v1420
      %v1677 = vpack.c.b16 %v1421, %v1421
      %v1678 = vpack.c.b16 %v1422, %v1422
      %v1679 = vpack.c.b16 %v1423, %v1423
      %v1680 = vpack.c.b16 %v1424, %v1424
      %v1681 = vpack.c.b16 %v1425, %v1425
      %v1682 = vpack.c.b16 %v1426, %v1426
      %v1683 = vpack.c.b16 %v1427, %v1427
      %v1684 = vpack.c.b16 %v1428, %v1428
      %v1685 = vpack.c.b16 %v1429, %v1429
      %v1686 = vpack.c.b16 %v1430, %v1430
      %v1687 = vpack.c.b16 %v1431, %v1431
      %v1688 = vpack.c.b16 %v1432, %v1432
      %v1689 = vpack.c.b16 %v1433, %v1433
      %vm1946 = vcmask 519168
      %1947 = vst.msk [vmem:[%s145] sm:$0xf] %vm1946, %v1434
      %1948 = vst.msk [vmem:[%s145 + $0x4] sm:$0xf] %vm1946, %v1435
      %1949 = vst.msk [vmem:[%s145 + $0x8] sm:$0xf] %vm1946, %v1436
      %1950 = vst.msk [vmem:[%s145 + $0xc] sm:$0xf] %vm1946, %v1437
      %1951 = vst.msk [vmem:[%s145 + $0x10] sm:$0xf] %vm1946, %v1438
      %1952 = vst.msk [vmem:[%s145 + $0x14] sm:$0xf] %vm1946, %v1439
      %1953 = vst.msk [vmem:[%s145 + $0x18] sm:$0xf] %vm1946, %v1440
      %1954 = vst.msk [vmem:[%s145 + $0x1c] sm:$0xf] %vm1946, %v1441
      %1955 = vst.msk [vmem:[%s145 + $0x20] sm:$0xf] %vm1946, %v1442
      %1956 = vst.msk [vmem:[%s145 + $0x24] sm:$0xf] %vm1946, %v1443
      %1957 = vst.msk [vmem:[%s145 + $0x28] sm:$0xf] %vm1946, %v1444
      %1958 = vst.msk [vmem:[%s145 + $0x2c] sm:$0xf] %vm1946, %v1445
      %1959 = vst.msk [vmem:[%s145 + $0x30] sm:$0xf] %vm1946, %v1446
      %1960 = vst.msk [vmem:[%s145 + $0x34] sm:$0xf] %vm1946, %v1447
      %1961 = vst.msk [vmem:[%s145 + $0x38] sm:$0xf] %vm1946, %v1448
      %1962 = vst.msk [vmem:[%s145 + $0x3c] sm:$0xf] %vm1946, %v1449
      %1963 = vst.msk [vmem:[%s145 + $0x40] sm:$0xf] %vm1946, %v1450
      %1964 = vst.msk [vmem:[%s145 + $0x44] sm:$0xf] %vm1946, %v1451
      %1965 = vst.msk [vmem:[%s145 + $0x48] sm:$0xf] %vm1946, %v1452
      %1966 = vst.msk [vmem:[%s145 + $0x4c] sm:$0xf] %vm1946, %v1453
      %1967 = vst.msk [vmem:[%s145 + $0x50] sm:$0xf] %vm1946, %v1454
      %1968 = vst.msk [vmem:[%s145 + $0x54] sm:$0xf] %vm1946, %v1455
      %1969 = vst.msk [vmem:[%s145 + $0x58] sm:$0xf] %vm1946, %v1456
      %1970 = vst.msk [vmem:[%s145 + $0x5c] sm:$0xf] %vm1946, %v1457
      %1971 = vst.msk [vmem:[%s145 + $0x60] sm:$0xf] %vm1946, %v1458
      %1972 = vst.msk [vmem:[%s145 + $0x64] sm:$0xf] %vm1946, %v1459
      %1973 = vst.msk [vmem:[%s145 + $0x68] sm:$0xf] %vm1946, %v1460
      %1974 = vst.msk [vmem:[%s145 + $0x6c] sm:$0xf] %vm1946, %v1461
      %1975 = vst.msk [vmem:[%s145 + $0x70] sm:$0xf] %vm1946, %v1462
      %1976 = vst.msk [vmem:[%s145 + $0x74] sm:$0xf] %vm1946, %v1463
      %1977 = vst.msk [vmem:[%s145 + $0x78] sm:$0xf] %vm1946, %v1464
      %1978 = vst.msk [vmem:[%s145 + $0x7c] sm:$0xf] %vm1946, %v1465
      %1979 = vst.msk [vmem:[%s145 + $0x80] sm:$0xf] %vm1946, %v1466
      %1980 = vst.msk [vmem:[%s145 + $0x84] sm:$0xf] %vm1946, %v1467
      %1981 = vst.msk [vmem:[%s145 + $0x88] sm:$0xf] %vm1946, %v1468
      %1982 = vst.msk [vmem:[%s145 + $0x8c] sm:$0xf] %vm1946, %v1469
      %1983 = vst.msk [vmem:[%s145 + $0x90] sm:$0xf] %vm1946, %v1470
      %1984 = vst.msk [vmem:[%s145 + $0x94] sm:$0xf] %vm1946, %v1471
      %1985 = vst.msk [vmem:[%s145 + $0x98] sm:$0xf] %vm1946, %v1472
      %1986 = vst.msk [vmem:[%s145 + $0x9c] sm:$0xf] %vm1946, %v1473
      %1987 = vst.msk [vmem:[%s145 + $0xa0] sm:$0xf] %vm1946, %v1474
      %1988 = vst.msk [vmem:[%s145 + $0xa4] sm:$0xf] %vm1946, %v1475
      %1989 = vst.msk [vmem:[%s145 + $0xa8] sm:$0xf] %vm1946, %v1476
      %1990 = vst.msk [vmem:[%s145 + $0xac] sm:$0xf] %vm1946, %v1477
      %1991 = vst.msk [vmem:[%s145 + $0xb0] sm:$0xf] %vm1946, %v1478
      %1992 = vst.msk [vmem:[%s145 + $0xb4] sm:$0xf] %vm1946, %v1479
      %1993 = vst.msk [vmem:[%s145 + $0xb8] sm:$0xf] %vm1946, %v1480
      %1994 = vst.msk [vmem:[%s145 + $0xbc] sm:$0xf] %vm1946, %v1481
      %1995 = vst.msk [vmem:[%s145 + $0xc0] sm:$0xf] %vm1946, %v1482
      %1996 = vst.msk [vmem:[%s145 + $0xc4] sm:$0xf] %vm1946, %v1483
      %1997 = vst.msk [vmem:[%s145 + $0xc8] sm:$0xf] %vm1946, %v1484
      %1998 = vst.msk [vmem:[%s145 + $0xcc] sm:$0xf] %vm1946, %v1485
      %1999 = vst.msk [vmem:[%s145 + $0xd0] sm:$0xf] %vm1946, %v1486
      %2000 = vst.msk [vmem:[%s145 + $0xd4] sm:$0xf] %vm1946, %v1487
      %2001 = vst.msk [vmem:[%s145 + $0xd8] sm:$0xf] %vm1946, %v1488
      %2002 = vst.msk [vmem:[%s145 + $0xdc] sm:$0xf] %vm1946, %v1489
      %2003 = vst.msk [vmem:[%s145 + $0xe0] sm:$0xf] %vm1946, %v1490
      %2004 = vst.msk [vmem:[%s145 + $0xe4] sm:$0xf] %vm1946, %v1491
      %2005 = vst.msk [vmem:[%s145 + $0xe8] sm:$0xf] %vm1946, %v1492
      %2006 = vst.msk [vmem:[%s145 + $0xec] sm:$0xf] %vm1946, %v1493
      %2007 = vst.msk [vmem:[%s145 + $0xf0] sm:$0xf] %vm1946, %v1494
      %2008 = vst.msk [vmem:[%s145 + $0xf4] sm:$0xf] %vm1946, %v1495
      %2009 = vst.msk [vmem:[%s145 + $0xf8] sm:$0xf] %vm1946, %v1496
      %2010 = vst.msk [vmem:[%s145 + $0xfc] sm:$0xf] %vm1946, %v1497
      %2011 = vst.msk [vmem:[%s145 + $0x100] sm:$0xf] %vm1946, %v1498
      %2012 = vst.msk [vmem:[%s145 + $0x104] sm:$0xf] %vm1946, %v1499
      %2013 = vst.msk [vmem:[%s145 + $0x108] sm:$0xf] %vm1946, %v1500
      %2014 = vst.msk [vmem:[%s145 + $0x10c] sm:$0xf] %vm1946, %v1501
      %2015 = vst.msk [vmem:[%s145 + $0x110] sm:$0xf] %vm1946, %v1502
      %2016 = vst.msk [vmem:[%s145 + $0x114] sm:$0xf] %vm1946, %v1503
      %2017 = vst.msk [vmem:[%s145 + $0x118] sm:$0xf] %vm1946, %v1504
      %2018 = vst.msk [vmem:[%s145 + $0x11c] sm:$0xf] %vm1946, %v1505
      %2019 = vst.msk [vmem:[%s145 + $0x120] sm:$0xf] %vm1946, %v1506
      %2020 = vst.msk [vmem:[%s145 + $0x124] sm:$0xf] %vm1946, %v1507
      %2021 = vst.msk [vmem:[%s145 + $0x128] sm:$0xf] %vm1946, %v1508
      %2022 = vst.msk [vmem:[%s145 + $0x12c] sm:$0xf] %vm1946, %v1509
      %2023 = vst.msk [vmem:[%s145 + $0x130] sm:$0xf] %vm1946, %v1510
      %2024 = vst.msk [vmem:[%s145 + $0x134] sm:$0xf] %vm1946, %v1511
      %2025 = vst.msk [vmem:[%s145 + $0x138] sm:$0xf] %vm1946, %v1512
      %2026 = vst.msk [vmem:[%s145 + $0x13c] sm:$0xf] %vm1946, %v1513
      %2027 = vst.msk [vmem:[%s145 + $0x140] sm:$0xf] %vm1946, %v1514
      %2028 = vst.msk [vmem:[%s145 + $0x144] sm:$0xf] %vm1946, %v1515
      %2029 = vst.msk [vmem:[%s145 + $0x148] sm:$0xf] %vm1946, %v1516
      %2030 = vst.msk [vmem:[%s145 + $0x14c] sm:$0xf] %vm1946, %v1517
      %2031 = vst.msk [vmem:[%s145 + $0x150] sm:$0xf] %vm1946, %v1518
      %2032 = vst.msk [vmem:[%s145 + $0x154] sm:$0xf] %vm1946, %v1519
      %2033 = vst.msk [vmem:[%s145 + $0x158] sm:$0xf] %vm1946, %v1520
      %2034 = vst.msk [vmem:[%s145 + $0x15c] sm:$0xf] %vm1946, %v1521
      %2035 = vst.msk [vmem:[%s145 + $0x160] sm:$0xf] %vm1946, %v1522
      %2036 = vst.msk [vmem:[%s145 + $0x164] sm:$0xf] %vm1946, %v1523
      %2037 = vst.msk [vmem:[%s145 + $0x168] sm:$0xf] %vm1946, %v1524
      %2038 = vst.msk [vmem:[%s145 + $0x16c] sm:$0xf] %vm1946, %v1525
      %2039 = vst.msk [vmem:[%s145 + $0x170] sm:$0xf] %vm1946, %v1526
      %2040 = vst.msk [vmem:[%s145 + $0x174] sm:$0xf] %vm1946, %v1527
      %2041 = vst.msk [vmem:[%s145 + $0x178] sm:$0xf] %vm1946, %v1528
      %2042 = vst.msk [vmem:[%s145 + $0x17c] sm:$0xf] %vm1946, %v1529
      %2043 = vst.msk [vmem:[%s145 + $0x180] sm:$0xf] %vm1946, %v1530
      %2044 = vst.msk [vmem:[%s145 + $0x184] sm:$0xf] %vm1946, %v1531
      %2045 = vst.msk [vmem:[%s145 + $0x188] sm:$0xf] %vm1946, %v1532
      %2046 = vst.msk [vmem:[%s145 + $0x18c] sm:$0xf] %vm1946, %v1533
      %2047 = vst.msk [vmem:[%s145 + $0x190] sm:$0xf] %vm1946, %v1534
      %2048 = vst.msk [vmem:[%s145 + $0x194] sm:$0xf] %vm1946, %v1535
      %2049 = vst.msk [vmem:[%s145 + $0x198] sm:$0xf] %vm1946, %v1536
      %2050 = vst.msk [vmem:[%s145 + $0x19c] sm:$0xf] %vm1946, %v1537
      %2051 = vst.msk [vmem:[%s145 + $0x1a0] sm:$0xf] %vm1946, %v1538
      %2052 = vst.msk [vmem:[%s145 + $0x1a4] sm:$0xf] %vm1946, %v1539
      %2053 = vst.msk [vmem:[%s145 + $0x1a8] sm:$0xf] %vm1946, %v1540
      %2054 = vst.msk [vmem:[%s145 + $0x1ac] sm:$0xf] %vm1946, %v1541
      %2055 = vst.msk [vmem:[%s145 + $0x1b0] sm:$0xf] %vm1946, %v1542
      %2056 = vst.msk [vmem:[%s145 + $0x1b4] sm:$0xf] %vm1946, %v1543
      %2057 = vst.msk [vmem:[%s145 + $0x1b8] sm:$0xf] %vm1946, %v1544
      %2058 = vst.msk [vmem:[%s145 + $0x1bc] sm:$0xf] %vm1946, %v1545
      %2059 = vst.msk [vmem:[%s145 + $0x1c0] sm:$0xf] %vm1946, %v1546
      %2060 = vst.msk [vmem:[%s145 + $0x1c4] sm:$0xf] %vm1946, %v1547
      %2061 = vst.msk [vmem:[%s145 + $0x1c8] sm:$0xf] %vm1946, %v1548
      %2062 = vst.msk [vmem:[%s145 + $0x1cc] sm:$0xf] %vm1946, %v1549
      %2063 = vst.msk [vmem:[%s145 + $0x1d0] sm:$0xf] %vm1946, %v1550
      %2064 = vst.msk [vmem:[%s145 + $0x1d4] sm:$0xf] %vm1946, %v1551
      %2065 = vst.msk [vmem:[%s145 + $0x1d8] sm:$0xf] %vm1946, %v1552
      %2066 = vst.msk [vmem:[%s145 + $0x1dc] sm:$0xf] %vm1946, %v1553
      %2067 = vst.msk [vmem:[%s145 + $0x1e0] sm:$0xf] %vm1946, %v1554
      %2068 = vst.msk [vmem:[%s145 + $0x1e4] sm:$0xf] %vm1946, %v1555
      %2069 = vst.msk [vmem:[%s145 + $0x1e8] sm:$0xf] %vm1946, %v1556
      %2070 = vst.msk [vmem:[%s145 + $0x1ec] sm:$0xf] %vm1946, %v1557
      %2071 = vst.msk [vmem:[%s145 + $0x1f0] sm:$0xf] %vm1946, %v1558
      %2072 = vst.msk [vmem:[%s145 + $0x1f4] sm:$0xf] %vm1946, %v1559
      %2073 = vst.msk [vmem:[%s145 + $0x1f8] sm:$0xf] %vm1946, %v1560
      %2074 = vst.msk [vmem:[%s145 + $0x1fc] sm:$0xf] %vm1946, %v1561
      %2075 = vst.msk [vmem:[%s145 + $0x200] sm:$0xf] %vm1946, %v1562
      %2076 = vst.msk [vmem:[%s145 + $0x204] sm:$0xf] %vm1946, %v1563
      %2077 = vst.msk [vmem:[%s145 + $0x208] sm:$0xf] %vm1946, %v1564
      %2078 = vst.msk [vmem:[%s145 + $0x20c] sm:$0xf] %vm1946, %v1565
      %2079 = vst.msk [vmem:[%s145 + $0x210] sm:$0xf] %vm1946, %v1566
      %2080 = vst.msk [vmem:[%s145 + $0x214] sm:$0xf] %vm1946, %v1567
      %2081 = vst.msk [vmem:[%s145 + $0x218] sm:$0xf] %vm1946, %v1568
      %2082 = vst.msk [vmem:[%s145 + $0x21c] sm:$0xf] %vm1946, %v1569
      %2083 = vst.msk [vmem:[%s145 + $0x220] sm:$0xf] %vm1946, %v1570
      %2084 = vst.msk [vmem:[%s145 + $0x224] sm:$0xf] %vm1946, %v1571
      %2085 = vst.msk [vmem:[%s145 + $0x228] sm:$0xf] %vm1946, %v1572
      %2086 = vst.msk [vmem:[%s145 + $0x22c] sm:$0xf] %vm1946, %v1573
      %2087 = vst.msk [vmem:[%s145 + $0x230] sm:$0xf] %vm1946, %v1574
      %2088 = vst.msk [vmem:[%s145 + $0x234] sm:$0xf] %vm1946, %v1575
      %2089 = vst.msk [vmem:[%s145 + $0x238] sm:$0xf] %vm1946, %v1576
      %2090 = vst.msk [vmem:[%s145 + $0x23c] sm:$0xf] %vm1946, %v1577
      %2091 = vst.msk [vmem:[%s145 + $0x240] sm:$0xf] %vm1946, %v1578
      %2092 = vst.msk [vmem:[%s145 + $0x244] sm:$0xf] %vm1946, %v1579
      %2093 = vst.msk [vmem:[%s145 + $0x248] sm:$0xf] %vm1946, %v1580
      %2094 = vst.msk [vmem:[%s145 + $0x24c] sm:$0xf] %vm1946, %v1581
      %2095 = vst.msk [vmem:[%s145 + $0x250] sm:$0xf] %vm1946, %v1582
      %2096 = vst.msk [vmem:[%s145 + $0x254] sm:$0xf] %vm1946, %v1583
      %2097 = vst.msk [vmem:[%s145 + $0x258] sm:$0xf] %vm1946, %v1584
      %2098 = vst.msk [vmem:[%s145 + $0x25c] sm:$0xf] %vm1946, %v1585
      %2099 = vst.msk [vmem:[%s145 + $0x260] sm:$0xf] %vm1946, %v1586
      %2100 = vst.msk [vmem:[%s145 + $0x264] sm:$0xf] %vm1946, %v1587
      %2101 = vst.msk [vmem:[%s145 + $0x268] sm:$0xf] %vm1946, %v1588
      %2102 = vst.msk [vmem:[%s145 + $0x26c] sm:$0xf] %vm1946, %v1589
      %2103 = vst.msk [vmem:[%s145 + $0x270] sm:$0xf] %vm1946, %v1590
      %2104 = vst.msk [vmem:[%s145 + $0x274] sm:$0xf] %vm1946, %v1591
      %2105 = vst.msk [vmem:[%s145 + $0x278] sm:$0xf] %vm1946, %v1592
      %2106 = vst.msk [vmem:[%s145 + $0x27c] sm:$0xf] %vm1946, %v1593
      %2107 = vst.msk [vmem:[%s145 + $0x280] sm:$0xf] %vm1946, %v1594
      %2108 = vst.msk [vmem:[%s145 + $0x284] sm:$0xf] %vm1946, %v1595
      %2109 = vst.msk [vmem:[%s145 + $0x288] sm:$0xf] %vm1946, %v1596
      %2110 = vst.msk [vmem:[%s145 + $0x28c] sm:$0xf] %vm1946, %v1597
      %2111 = vst.msk [vmem:[%s145 + $0x290] sm:$0xf] %vm1946, %v1598
      %2112 = vst.msk [vmem:[%s145 + $0x294] sm:$0xf] %vm1946, %v1599
      %2113 = vst.msk [vmem:[%s145 + $0x298] sm:$0xf] %vm1946, %v1600
      %2114 = vst.msk [vmem:[%s145 + $0x29c] sm:$0xf] %vm1946, %v1601
      %2115 = vst.msk [vmem:[%s145 + $0x2a0] sm:$0xf] %vm1946, %v1602
      %2116 = vst.msk [vmem:[%s145 + $0x2a4] sm:$0xf] %vm1946, %v1603
      %2117 = vst.msk [vmem:[%s145 + $0x2a8] sm:$0xf] %vm1946, %v1604
      %2118 = vst.msk [vmem:[%s145 + $0x2ac] sm:$0xf] %vm1946, %v1605
      %2119 = vst.msk [vmem:[%s145 + $0x2b0] sm:$0xf] %vm1946, %v1606
      %2120 = vst.msk [vmem:[%s145 + $0x2b4] sm:$0xf] %vm1946, %v1607
      %2121 = vst.msk [vmem:[%s145 + $0x2b8] sm:$0xf] %vm1946, %v1608
      %2122 = vst.msk [vmem:[%s145 + $0x2bc] sm:$0xf] %vm1946, %v1609
      %2123 = vst.msk [vmem:[%s145 + $0x2c0] sm:$0xf] %vm1946, %v1610
      %2124 = vst.msk [vmem:[%s145 + $0x2c4] sm:$0xf] %vm1946, %v1611
      %2125 = vst.msk [vmem:[%s145 + $0x2c8] sm:$0xf] %vm1946, %v1612
      %2126 = vst.msk [vmem:[%s145 + $0x2cc] sm:$0xf] %vm1946, %v1613
      %2127 = vst.msk [vmem:[%s145 + $0x2d0] sm:$0xf] %vm1946, %v1614
      %2128 = vst.msk [vmem:[%s145 + $0x2d4] sm:$0xf] %vm1946, %v1615
      %2129 = vst.msk [vmem:[%s145 + $0x2d8] sm:$0xf] %vm1946, %v1616
      %2130 = vst.msk [vmem:[%s145 + $0x2dc] sm:$0xf] %vm1946, %v1617
      %2131 = vst.msk [vmem:[%s145 + $0x2e0] sm:$0xf] %vm1946, %v1618
      %2132 = vst.msk [vmem:[%s145 + $0x2e4] sm:$0xf] %vm1946, %v1619
      %2133 = vst.msk [vmem:[%s145 + $0x2e8] sm:$0xf] %vm1946, %v1620
      %2134 = vst.msk [vmem:[%s145 + $0x2ec] sm:$0xf] %vm1946, %v1621
      %2135 = vst.msk [vmem:[%s145 + $0x2f0] sm:$0xf] %vm1946, %v1622
      %2136 = vst.msk [vmem:[%s145 + $0x2f4] sm:$0xf] %vm1946, %v1623
      %2137 = vst.msk [vmem:[%s145 + $0x2f8] sm:$0xf] %vm1946, %v1624
      %2138 = vst.msk [vmem:[%s145 + $0x2fc] sm:$0xf] %vm1946, %v1625
      %2139 = vst.msk [vmem:[%s145 + $0x300] sm:$0xf] %vm1946, %v1626
      %2140 = vst.msk [vmem:[%s145 + $0x304] sm:$0xf] %vm1946, %v1627
      %2141 = vst.msk [vmem:[%s145 + $0x308] sm:$0xf] %vm1946, %v1628
      %2142 = vst.msk [vmem:[%s145 + $0x30c] sm:$0xf] %vm1946, %v1629
      %2143 = vst.msk [vmem:[%s145 + $0x310] sm:$0xf] %vm1946, %v1630
      %2144 = vst.msk [vmem:[%s145 + $0x314] sm:$0xf] %vm1946, %v1631
      %2145 = vst.msk [vmem:[%s145 + $0x318] sm:$0xf] %vm1946, %v1632
      %2146 = vst.msk [vmem:[%s145 + $0x31c] sm:$0xf] %vm1946, %v1633
      %2147 = vst.msk [vmem:[%s145 + $0x320] sm:$0xf] %vm1946, %v1634
      %2148 = vst.msk [vmem:[%s145 + $0x324] sm:$0xf] %vm1946, %v1635
      %2149 = vst.msk [vmem:[%s145 + $0x328] sm:$0xf] %vm1946, %v1636
      %2150 = vst.msk [vmem:[%s145 + $0x32c] sm:$0xf] %vm1946, %v1637
      %2151 = vst.msk [vmem:[%s145 + $0x330] sm:$0xf] %vm1946, %v1638
      %2152 = vst.msk [vmem:[%s145 + $0x334] sm:$0xf] %vm1946, %v1639
      %2153 = vst.msk [vmem:[%s145 + $0x338] sm:$0xf] %vm1946, %v1640
      %2154 = vst.msk [vmem:[%s145 + $0x33c] sm:$0xf] %vm1946, %v1641
      %2155 = vst.msk [vmem:[%s145 + $0x340] sm:$0xf] %vm1946, %v1642
      %2156 = vst.msk [vmem:[%s145 + $0x344] sm:$0xf] %vm1946, %v1643
      %2157 = vst.msk [vmem:[%s145 + $0x348] sm:$0xf] %vm1946, %v1644
      %2158 = vst.msk [vmem:[%s145 + $0x34c] sm:$0xf] %vm1946, %v1645
      %2159 = vst.msk [vmem:[%s145 + $0x350] sm:$0xf] %vm1946, %v1646
      %2160 = vst.msk [vmem:[%s145 + $0x354] sm:$0xf] %vm1946, %v1647
      %2161 = vst.msk [vmem:[%s145 + $0x358] sm:$0xf] %vm1946, %v1648
      %2162 = vst.msk [vmem:[%s145 + $0x35c] sm:$0xf] %vm1946, %v1649
      %2163 = vst.msk [vmem:[%s145 + $0x360] sm:$0xf] %vm1946, %v1650
      %2164 = vst.msk [vmem:[%s145 + $0x364] sm:$0xf] %vm1946, %v1651
      %2165 = vst.msk [vmem:[%s145 + $0x368] sm:$0xf] %vm1946, %v1652
      %2166 = vst.msk [vmem:[%s145 + $0x36c] sm:$0xf] %vm1946, %v1653
      %2167 = vst.msk [vmem:[%s145 + $0x370] sm:$0xf] %vm1946, %v1654
      %2168 = vst.msk [vmem:[%s145 + $0x374] sm:$0xf] %vm1946, %v1655
      %2169 = vst.msk [vmem:[%s145 + $0x378] sm:$0xf] %vm1946, %v1656
      %2170 = vst.msk [vmem:[%s145 + $0x37c] sm:$0xf] %vm1946, %v1657
      %2171 = vst.msk [vmem:[%s145 + $0x380] sm:$0xf] %vm1946, %v1658
      %2172 = vst.msk [vmem:[%s145 + $0x384] sm:$0xf] %vm1946, %v1659
      %2173 = vst.msk [vmem:[%s145 + $0x388] sm:$0xf] %vm1946, %v1660
      %2174 = vst.msk [vmem:[%s145 + $0x38c] sm:$0xf] %vm1946, %v1661
      %2175 = vst.msk [vmem:[%s145 + $0x390] sm:$0xf] %vm1946, %v1662
      %2176 = vst.msk [vmem:[%s145 + $0x394] sm:$0xf] %vm1946, %v1663
      %2177 = vst.msk [vmem:[%s145 + $0x398] sm:$0xf] %vm1946, %v1664
      %2178 = vst.msk [vmem:[%s145 + $0x39c] sm:$0xf] %vm1946, %v1665
      %2179 = vst.msk [vmem:[%s145 + $0x3a0] sm:$0xf] %vm1946, %v1666
      %2180 = vst.msk [vmem:[%s145 + $0x3a4] sm:$0xf] %vm1946, %v1667
      %2181 = vst.msk [vmem:[%s145 + $0x3a8] sm:$0xf] %vm1946, %v1668
      %2182 = vst.msk [vmem:[%s145 + $0x3ac] sm:$0xf] %vm1946, %v1669
      %2183 = vst.msk [vmem:[%s145 + $0x3b0] sm:$0xf] %vm1946, %v1670
      %2184 = vst.msk [vmem:[%s145 + $0x3b4] sm:$0xf] %vm1946, %v1671
      %2185 = vst.msk [vmem:[%s145 + $0x3b8] sm:$0xf] %vm1946, %v1672
      %2186 = vst.msk [vmem:[%s145 + $0x3bc] sm:$0xf] %vm1946, %v1673
      %2187 = vst.msk [vmem:[%s145 + $0x3c0] sm:$0xf] %vm1946, %v1674
      %2188 = vst.msk [vmem:[%s145 + $0x3c4] sm:$0xf] %vm1946, %v1675
      %2189 = vst.msk [vmem:[%s145 + $0x3c8] sm:$0xf] %vm1946, %v1676
      %2190 = vst.msk [vmem:[%s145 + $0x3cc] sm:$0xf] %vm1946, %v1677
      %2191 = vst.msk [vmem:[%s145 + $0x3d0] sm:$0xf] %vm1946, %v1678
      %2192 = vst.msk [vmem:[%s145 + $0x3d4] sm:$0xf] %vm1946, %v1679
      %2193 = vst.msk [vmem:[%s145 + $0x3d8] sm:$0xf] %vm1946, %v1680
      %2194 = vst.msk [vmem:[%s145 + $0x3dc] sm:$0xf] %vm1946, %v1681
      %2195 = vst.msk [vmem:[%s145 + $0x3e0] sm:$0xf] %vm1946, %v1682
      %2196 = vst.msk [vmem:[%s145 + $0x3e4] sm:$0xf] %vm1946, %v1683
      %2197 = vst.msk [vmem:[%s145 + $0x3e8] sm:$0xf] %vm1946, %v1684
      %2198 = vst.msk [vmem:[%s145 + $0x3ec] sm:$0xf] %vm1946, %v1685
      %2199 = vst.msk [vmem:[%s145 + $0x3f0] sm:$0xf] %vm1946, %v1686
      %2200 = vst.msk [vmem:[%s145 + $0x3f4] sm:$0xf] %vm1946, %v1687
      %2201 = vst.msk [vmem:[%s145 + $0x3f8] sm:$0xf] %vm1946, %v1688
      %2202 = vst.msk [vmem:[%s145 + $0x3fc] sm:$0xf] %vm1946, %v1689
      %s2203 = smul.u32 256, %s13
      %p2204 = scmp.lt.s32.totalorder %s2203, 6399
      %s2205 = scalar_select %p2204, %s2203, 6399
      %s2206 = smul.addr %s2205, 4
      %s2207 = scalar_lea.vmem %s2, %s2206
      // Predicated region
      $region29: #{tpu_custom_call.1} parent=27 // pred_check
        %p2208 = pneg %p78
      $region30: #{tpu_custom_call.1} parent=27 // pred_check_branch
        %2210 = sbr.rel (%p2208) target = $region32
      $region31: #{tpu_custom_call.1} parent=27 // pred_region
        %s2211 = smul.u32 256, %s13
      $region32: #{tpu_custom_call.1} parent=27 // pred_fallthru
        _
    $region28: #{tpu_custom_call.1} parent=5 // pred_fallthru
      _
    %p2212 = scmp.le.s32.totalorder 2, %s8
    // Predicated region
    $region33: #{tpu_custom_call.1} parent=5 // pred_check
      %p2213 = pneg %p2212
    $region34: #{tpu_custom_call.1} parent=5 // pred_check_branch
      %2215 = sbr.rel (%p2213) target = $region36
    $region35: #{tpu_custom_call.1} parent=5 // pred_region
      %s2216 = ssub.s32 %s8, 2
      // Predicated region
      $region37: #{tpu_custom_call.1} parent=35 // pred_check
        %p2217 = pneg %p84
      $region38: #{tpu_custom_call.1} parent=35 // pred_check_branch
        %2219 = sbr.rel (%p2217) target = $region40
      $region39: #{tpu_custom_call.1} parent=35 // pred_region
        %s2220 = smul.u32 256, %s14
        %p2221 = scmp.lt.s32.totalorder %s2220, 6399
        %s2222 = scalar_select %p2221, %s2220, 6399
        %s2223 = smul.addr %s2222, 4
        %s2224 = scalar_lea.vmem %s2, %s2223
      $region40: #{tpu_custom_call.1} parent=35 // pred_fallthru
        _
    $region36: #{tpu_custom_call.1} parent=5 // pred_fallthru
      _
  $region6: #{tpu_custom_call.1} parent=0 // loop_footer
    %s12 = sadd.s32 1, %s8
  $region7: #{tpu_custom_call.1} parent=0 // loop_footer_branch
    %7 = sbr.rel target = $region3
  $region8: #{tpu_custom_call.1} parent=0 // loop_exit
    _

</llo_original>
